<compile_context>
chip_gen: v7x
topology: tpu7x:2x2x1
jax: 0.10.0
libtpu: 0.0.40
codegen_flags: <defaults>
</compile_context>

<pallas_src>
import functools

import jax
import jax.numpy as jnp
from jax.experimental import pallas as pl
from jax.experimental.pallas import tpu as pltpu

MIN_NORM = 1e-15        # torch clamp_min on norms / denominators
EPS_F32 = 4e-3          # torch PoincareBall.proj eps for float32
ARTANH_CLAMP = 1e-7     # torch clamps to 1-1e-15 (== 1.0 in f32); 1e-7 keeps f32 finite


# ----------------------------- in-kernel Poincare helpers -----------------------------
def _norm_and_inv(v):
    """Row L2 norm (clamped at MIN_NORM) and its inverse, via rsqrt (EUP, no divide)."""
    sq = jnp.maximum(jnp.sum(v * v, axis=-1, keepdims=True), MIN_NORM * MIN_NORM)
    inv = jax.lax.rsqrt(sq)
    return sq * inv, inv


def _artanh(z):
    z = jnp.clip(z, -1.0 + ARTANH_CLAMP, 1.0 - ARTANH_CLAMP)
    return 0.5 * (jnp.log1p(z) - jnp.log1p(-z))


def _logmap0(p, sqrt_c):
    pn, inv_pn = _norm_and_inv(p)
    return (_artanh(sqrt_c * pn) * inv_pn * (1.0 / sqrt_c)) * p


def _expmap0(u, sqrt_c):
    un, inv_un = _norm_and_inv(u)
    return (jnp.tanh(sqrt_c * un) * inv_un * (1.0 / sqrt_c)) * u


def _proj(p, sqrt_c):
    pn, inv_pn = _norm_and_inv(p)
    maxnorm = (1.0 - EPS_F32) / sqrt_c
    return jnp.where(pn > maxnorm, p * (inv_pn * maxnorm), p)


# ----------------------------- Kernel A: HypLinear + logmap0 --------------------------
def _hyp_linear_kernel(x_ref, wt_ref, b_ref, out_ref, *, c_in):
    """HypLinear (mobius_matvec + hyperbolic bias + proj) fused with logmap0 -> x_tangent."""
    sc = c_in ** 0.5
    x = x_ref[...]                                   # (TN, Din) points on the ball
    wt = wt_ref[...]                                 # (Din, Dout) == weight.T
    b = b_ref[...]                                   # (1, Dout) euclidean bias

    # mobius_matvec(weight, x, c)
    xn, inv_xn = _norm_and_inv(x)
    mx = jnp.dot(x, wt, preferred_element_type=jnp.float32)          # (TN, Dout)
    mxn, inv_mxn = _norm_and_inv(mx)
    res_c = (jnp.tanh(mxn * inv_xn * _artanh(sc * xn)) * inv_mxn * (1.0 / sc)) * mx
    zero_row = jnp.sum(jnp.abs(mx), axis=-1, keepdims=True) == 0.0
    res = _proj(jnp.where(zero_row, 0.0, res_c), sc)

    # hyperbolic bias: proj(expmap0(proj_tan0(b))) then mobius_add, then proj
    hb = _proj(_expmap0(b, sc), sc)                                  # (1, Dout)
    x2 = jnp.sum(res * res, axis=-1, keepdims=True)
    y2 = jnp.sum(hb * hb, axis=-1, keepdims=True)
    xy = jnp.sum(res * hb, axis=-1, keepdims=True)
    num = (1.0 + 2.0 * c_in * xy + c_in * y2) * res + (1.0 - c_in * x2) * hb
    den = jnp.maximum(1.0 + 2.0 * c_in * xy + (c_in * c_in) * x2 * y2, MIN_NORM)
    res = _proj(num * pl.reciprocal(den, approx=True), sc)

    # HypAgg prologue: x_tangent = logmap0(h, c_in), computed once here so the row-tiled
    # aggregation kernel never redoes this O(N*D) transcendental pass per tile.
    out_ref[...] = _logmap0(res, sc)


# ------------------ Kernel B: DenseAtt + aggregation + expmap0/proj + HypAct ----------
def _hyp_agg_act_kernel(xt_full_ref, xt_tile_ref, adj_ref, wl_ref, wr_ref, ab_ref,
                        out_ref, *, c_in, c_out, act):
    """One row tile of: sigmoid(DenseAtt)*adj -> support matmul -> expmap0/proj -> HypAct."""
    sc_in = c_in ** 0.5
    sc_out = c_out ** 0.5

    xt_full = xt_full_ref[...]                       # (N, D) f32, VMEM-resident across tiles
    xt_tile = xt_tile_ref[...]                       # (TN, D) f32, this tile's query rows
    adj = adj_ref[...].astype(jnp.float32)           # (TN, N), streamed as bf16

    # DenseAtt: sigmoid(w_l . x_i + w_r . x_j + b) * adj
    left = jnp.sum(xt_tile * wl_ref[...], axis=-1, keepdims=True)     # (TN, 1)  VPU + lane reduce
    right = jax.lax.dot_general(wr_ref[...], xt_full, (((0,), (1,)), ((), ())),
                                preferred_element_type=jnp.float32)   # (1, N)   lane-major layout
    logits = left + right + ab_ref[0]
    att = 0.5 + 0.5 * jnp.tanh(0.5 * logits)          # sigmoid via a single EUP tanh on the N^2 path
    adj_att = att * adj                               # (TN, N) f32

    # support_t = adj_att @ x_tangent  (bf16 MXU operands, f32 accumulation)
    support = jnp.dot(adj_att.astype(jnp.bfloat16), xt_full.astype(jnp.bfloat16),
                      preferred_element_type=jnp.float32)             # (TN, D)

    # HypAgg epilogue: proj(expmap0(support, c_in), c_in)
    h = _proj(_expmap0(support, sc_in), sc_in)

    # HypAct: proj(expmap0(act(logmap0(h, c_in)), c_out), c_out); proj_tan0 is the identity.
    xt_act = act(_logmap0(h, sc_in))
    out_ref[...] = _proj(_expmap0(xt_act, sc_out), sc_out).astype(out_ref.dtype)


# ----------------------------------- wrapper -------------------------------------------
def _choose_row_tile(n, d, adj_elem_bytes, budget_bytes=40 * 1024 * 1024):
    """Largest row tile whose working set (double-buffered adj tile + resident x_tangent +
    tiled x_tangent/out) fits the budget (sized for v7x's 64 MiB VMEM; fine on v5e/v6e)."""
    resident = 2 * n * d * 4
    for tn in (1024, 512, 256, 128, 64, 32, 16, 8):
        if tn >= n:
            continue
        if 2 * tn * n * adj_elem_bytes + resident + 4 * tn * d * 4 <= budget_bytes:
            return tn
    return min(n, 8)


def hyperbolic_graph_convolution(x, adj, weight, bias, att_weight, att_bias, *,
                                 c_in=1.0, c_out=1.0, act=jax.nn.relu,
                                 tile_rows=None, adj_dtype=jnp.bfloat16):
    """Forward of HyperbolicGraphConvolution (PoincareBall, use_att=True, local_agg=False).

    x: (N, D_in) points on the ball; adj: (N, N) dense adjacency;
    weight: (D_out, D_in), bias: (D_out,)  -- HypLinear;
    att_weight: (2*D_out,), att_bias: (1,) -- DenseAtt nn.Linear(2*D_out, 1).
    """
    n, d_in = x.shape
    d_out = weight.shape[0]

    x = x.astype(jnp.float32)
    wt = weight.astype(jnp.float32).T                       # (D_in, D_out)
    b = bias.astype(jnp.float32).reshape(1, d_out)
    wl = att_weight[:d_out].astype(jnp.float32).reshape(1, d_out)
    wr = att_weight[d_out:].astype(jnp.float32).reshape(d_out, 1)
    ab = att_bias.astype(jnp.float32).reshape(1)
    adj = adj.astype(adj_dtype)                             # bf16 halves the N^2 HBM stream
    adj_bytes = jnp.dtype(adj_dtype).itemsize

    tn = tile_rows if tile_rows is not None else _choose_row_tile(n, d_out, adj_bytes)
    grid = (pl.cdiv(n, tn),)

    # ---- Kernel A: HypLinear + logmap0 -> x_tangent (N, D_out) ----
    est_a = (2 * tn * d_in * 4 + 2 * d_in * d_out * 4 + 2 * d_out * 4
             + 2 * tn * d_out * 4 + (1 << 16))
    x_tan = pl.pallas_call(
        functools.partial(_hyp_linear_kernel, c_in=float(c_in)),
        out_shape=jax.ShapeDtypeStruct((n, d_out), jnp.float32),
        grid=grid,
        in_specs=[
            pl.BlockSpec((tn, d_in), lambda i: (i, 0)),
            pl.BlockSpec((d_in, d_out), lambda i: (0, 0)),
            pl.BlockSpec((1, d_out), lambda i: (0, 0)),
        ],
        out_specs=pl.BlockSpec((tn, d_out), lambda i: (i, 0)),
        compiler_params=pltpu.CompilerParams(
            dimension_semantics=("parallel",),
            vmem_limit_bytes=int(min(64 << 20, max(32 << 20, 2 * est_a)))),
    )(x, wt, b)

    # ---- Kernel B: DenseAtt + aggregation + expmap0/proj + HypAct ----
    est_b = (2 * tn * n * adj_bytes          # double-buffered adjacency row tiles
             + 2 * n * d_out * 4             # resident x_tangent
             + 4 * tn * d_out * 4            # tiled x_tangent + output, double-buffered
             + 4 * d_out * 4 + (1 << 16))
    out = pl.pallas_call(
        functools.partial(_hyp_agg_act_kernel, c_in=float(c_in), c_out=float(c_out), act=act),
        out_shape=jax.ShapeDtypeStruct((n, d_out), jnp.float32),
        grid=grid,
        in_specs=[
            pl.BlockSpec((n, d_out), lambda i: (0, 0)),     # x_tangent, fetched once, resident
            pl.BlockSpec((tn, d_out), lambda i: (i, 0)),    # x_tangent query-row tile
            pl.BlockSpec((tn, n), lambda i: (i, 0)),        # adjacency row tile (bf16 stream)
            pl.BlockSpec((1, d_out), lambda i: (0, 0)),     # w_left
            pl.BlockSpec((d_out, 1), lambda i: (0, 0)),     # w_right
            pl.BlockSpec(memory_space=pltpu.MemorySpace.SMEM),  # attention bias scalar
        ],
        out_specs=pl.BlockSpec((tn, d_out), lambda i: (i, 0)),
        compiler_params=pltpu.CompilerParams(
            dimension_semantics=("parallel",),              # disjoint row tiles -> megacore on v7x
            vmem_limit_bytes=int(min(64 << 20, max(32 << 20, 2 * est_b)))),
    )(x_tan, x_tan, adj, wl, wr, ab)
    return out


# ---------------- pure-JAX reference (exact f32 math, for validation) -------------------
def _reference(x, adj, weight, bias, att_weight, att_bias, c_in, c_out, act):
    def norm(v):
        return jnp.maximum(jnp.linalg.norm(v, axis=-1, keepdims=True), MIN_NORM)

    def artanh(z):
        z = jnp.clip(z, -1.0 + ARTANH_CLAMP, 1.0 - ARTANH_CLAMP)
        return 0.5 * (jnp.log1p(z) - jnp.log1p(-z))

    def logmap0(p, c):
        sc = c ** 0.5
        pn = norm(p)
        return artanh(sc * pn) / (sc * pn) * p

    def expmap0(u, c):
        sc = c ** 0.5
        un = norm(u)
        return jnp.tanh(sc * un) / (sc * un) * u

    def proj(p, c):
        pn = norm(p)
        maxn = (1.0 - EPS_F32) / (c ** 0.5)
        return jnp.where(pn > maxn, p / pn * maxn, p)

    def mobius_add(a, b, c):
        a2 = jnp.sum(a * a, -1, keepdims=True)
        b2 = jnp.sum(b * b, -1, keepdims=True)
        ab = jnp.sum(a * b, -1, keepdims=True)
        num = (1 + 2 * c * ab + c * b2) * a + (1 - c * a2) * b
        den = 1 + 2 * c * ab + c * c * a2 * b2
        return num / jnp.maximum(den, MIN_NORM)

    def mobius_matvec(m, p, c):
        sc = c ** 0.5
        pn = norm(p)
        mp = p @ m.T
        mpn = norm(mp)
        res_c = jnp.tanh(mpn / pn * artanh(sc * pn)) * mp / (mpn * sc)
        cond = jnp.sum(jnp.abs(mp), -1, keepdims=True) == 0
        return jnp.where(cond, 0.0, res_c)

    d_out = weight.shape[0]
    # HypLinear
    res = proj(mobius_matvec(weight, x, c_in), c_in)
    hyp_bias = proj(expmap0(bias[None, :], c_in), c_in)
    h = proj(mobius_add(res, hyp_bias, c_in), c_in)
    # HypAgg (use_att=True, local_agg=False)
    x_tan = logmap0(h, c_in)
    logits = ((x_tan @ att_weight[:d_out])[:, None]
              + (x_tan @ att_weight[d_out:])[None, :] + att_bias[0])
    adj_att = jax.nn.sigmoid(logits) * adj
    support = adj_att @ x_tan
    h = proj(expmap0(support, c_in), c_in)
    # HypAct
    xt = act(logmap0(h, c_in))
    return proj(expmap0(xt, c_out), c_out)


if __name__ == "__main__":
    # Small deterministic example: 256 nodes, 64 -> 128 features.
    # D_out=128 and N a multiple of 128 keep the logits / output stores lane-dense.
    N, D_IN, D_OUT = 256, 64, 128
    C_IN, C_OUT = 1.0, 0.5

    key = jax.random.PRNGKey(0)
    kx, kadj, kw, kb, ka = jax.random.split(key, 5)

    # Points inside the unit Poincare ball.
    x = 0.05 * jax.random.normal(kx, (N, D_IN), dtype=jnp.float32)
    # Dense symmetric adjacency with self loops, row-normalized.
    a = (jax.random.uniform(kadj, (N, N)) < 0.1).astype(jnp.float32)
    a = jnp.maximum(a, a.T) + jnp.eye(N, dtype=jnp.float32)
    adj = a / jnp.sum(a, axis=1, keepdims=True)

    # HypLinear + DenseAtt parameters.
    weight = 0.1 * jax.random.normal(kw, (D_OUT, D_IN), dtype=jnp.float32)
    bias = 0.01 * jax.random.normal(kb, (D_OUT,), dtype=jnp.float32)
    att_weight = 0.1 * jax.random.normal(ka, (2 * D_OUT,), dtype=jnp.float32)
    att_bias = jnp.array([0.01], dtype=jnp.float32)

    out = hyperbolic_graph_convolution(
        x, adj, weight, bias, att_weight, att_bias,
        c_in=C_IN, c_out=C_OUT, act=jax.nn.relu,
        tile_rows=64)                       # 4 row tiles -> exercises the pipelined path
    out = jax.block_until_ready(out)

    ref = _reference(x, adj, weight, bias, att_weight, att_bias, C_IN, C_OUT, jax.nn.relu)
    assert out.shape == (N, D_OUT)
    # Relaxed tolerance: the adjacency stream + support matmul run in bfloat16 (f32 accumulate).
    assert jnp.allclose(out, ref, atol=3e-3, rtol=3e-2), float(jnp.max(jnp.abs(out - ref)))
    print("KERNEL_OK")
</pallas_src>

<mosaic_0001>
module attributes {stable_mosaic.version = 11 : i64} {
  func.func @_hyp_linear_kernel(%arg0: i32, %arg1: memref<64x64xf32, #tpu.memory_space<vmem>>, %arg2: memref<64x128xf32, #tpu.memory_space<vmem>>, %arg3: memref<1x128xf32, #tpu.memory_space<vmem>>, %arg4: memref<64x128xf32, #tpu.memory_space<vmem>>) attributes {dimension_semantics = [#tpu.dimension_semantics<parallel>], iteration_bounds = array<i64: 4>, scalar_prefetch = 0 : i64, scratch_operands = 0 : i64, tpu.core_type = #tpu.core_type<tc>, window_params = [{transform_indices = @transform_0, window_bounds = array<i64: 64, 64>}, {pipeline_mode = #tpu.pipeline_mode<synchronous>, transform_indices = @transform_1, window_bounds = array<i64: 64, 128>}, {pipeline_mode = #tpu.pipeline_mode<synchronous>, transform_indices = @transform_2, window_bounds = array<i64: 1, 128>}, {transform_indices = @transform_3, window_bounds = array<i64: 64, 128>}]} {
    %c0 = arith.constant 0 : index
    %c0_0 = arith.constant 0 : index
    %0 = vector.load %arg1[%c0, %c0_0] : memref<64x64xf32, #tpu.memory_space<vmem>>, vector<64x64xf32>
    %c0_1 = arith.constant 0 : index
    %c0_2 = arith.constant 0 : index
    %1 = vector.load %arg2[%c0_1, %c0_2] : memref<64x128xf32, #tpu.memory_space<vmem>>, vector<64x128xf32>
    %c0_3 = arith.constant 0 : index
    %c0_4 = arith.constant 0 : index
    %2 = vector.load %arg3[%c0_3, %c0_4] : memref<1x128xf32, #tpu.memory_space<vmem>>, vector<1x128xf32>
    %3 = arith.mulf %0, %0 : vector<64x64xf32>
    %cst = arith.constant dense<0.000000e+00> : vector<64xf32>
    %4 = vector.multi_reduction <add>, %3, %cst [1] : vector<64x64xf32> to vector<64xf32>
    %5 = vector.shape_cast %4 : vector<64xf32> to vector<64x1xf32>
    %cst_5 = arith.constant 1.000000e-30 : f32
    %6 = vector.broadcast %cst_5 : f32 to vector<64x1xf32>
    %7 = arith.maximumf %5, %6 : vector<64x1xf32>
    %8 = math.rsqrt %7 : vector<64x1xf32>
    %9 = arith.mulf %7, %8 : vector<64x1xf32>
    %cst_6 = arith.constant dense<0.000000e+00> : vector<64x128xf32>
    %10 = tpu.matmul %0, %1, %cst_6 {dimension_numbers = #tpu.dot_dimension_numbers<[1], [0], [0], [1], [0, 0, 1, 1], [], []>} : vector<64x64xf32>, vector<64x128xf32>, vector<64x128xf32> -> vector<64x128xf32>
    %11 = arith.mulf %10, %10 : vector<64x128xf32>
    %cst_7 = arith.constant dense<0.000000e+00> : vector<64xf32>
    %12 = vector.multi_reduction <add>, %11, %cst_7 [1] : vector<64x128xf32> to vector<64xf32>
    %13 = vector.shape_cast %12 : vector<64xf32> to vector<64x1xf32>
    %cst_8 = arith.constant 1.000000e-30 : f32
    %14 = vector.broadcast %cst_8 : f32 to vector<64x1xf32>
    %15 = arith.maximumf %13, %14 : vector<64x1xf32>
    %16 = math.rsqrt %15 : vector<64x1xf32>
    %17 = arith.mulf %15, %16 : vector<64x1xf32>
    %18 = arith.mulf %17, %8 : vector<64x1xf32>
    %cst_9 = arith.constant 1.000000e+00 : f32
    %19 = vector.broadcast %cst_9 : f32 to vector<64x1xf32>
    %20 = arith.mulf %19, %9 : vector<64x1xf32>
    %cst_10 = arith.constant -0.99999988 : f32
    %cst_11 = arith.constant 0.99999988 : f32
    %21 = vector.broadcast %cst_10 : f32 to vector<64x1xf32>
    %22 = arith.maximumf %21, %20 : vector<64x1xf32>
    %23 = vector.broadcast %cst_11 : f32 to vector<64x1xf32>
    %24 = arith.minimumf %23, %22 : vector<64x1xf32>
    %25 = math.log1p %24 : vector<64x1xf32>
    %cst_12 = arith.constant 0.000000e+00 : f32
    %26 = vector.broadcast %cst_12 : f32 to vector<64x1xf32>
    %27 = arith.subf %26, %24 : vector<64x1xf32>
    %28 = math.log1p %27 : vector<64x1xf32>
    %29 = arith.subf %25, %28 : vector<64x1xf32>
    %cst_13 = arith.constant 5.000000e-01 : f32
    %30 = vector.broadcast %cst_13 : f32 to vector<64x1xf32>
    %31 = arith.mulf %30, %29 : vector<64x1xf32>
    %32 = arith.mulf %18, %31 : vector<64x1xf32>
    %33 = math.tanh %32 : vector<64x1xf32>
    %34 = arith.mulf %33, %16 : vector<64x1xf32>
    %cst_14 = arith.constant 1.000000e+00 : f32
    %35 = vector.broadcast %cst_14 : f32 to vector<64x1xf32>
    %36 = arith.mulf %34, %35 : vector<64x1xf32>
    %37 = vector.broadcast %36 : vector<64x1xf32> to vector<64x128xf32>
    %38 = arith.mulf %37, %10 : vector<64x128xf32>
    %39 = math.absf %10 : vector<64x128xf32>
    %cst_15 = arith.constant dense<0.000000e+00> : vector<64xf32>
    %40 = vector.multi_reduction <add>, %39, %cst_15 [1] : vector<64x128xf32> to vector<64xf32>
    %41 = vector.shape_cast %40 : vector<64xf32> to vector<64x1xf32>
    %cst_16 = arith.constant 0.000000e+00 : f32
    %42 = vector.broadcast %cst_16 : f32 to vector<64x1xf32>
    %43 = arith.cmpf oeq, %41, %42 : vector<64x1xf32>
    %cst_17 = arith.constant 0.000000e+00 : f32
    %44 = vector.shape_cast %43 : vector<64x1xi1> to vector<64x1xi1>
    %45 = vector.broadcast %44 : vector<64x1xi1> to vector<64x128xi1>
    %46 = vector.broadcast %cst_17 : f32 to vector<64x128xf32>
    %47 = arith.select %45, %46, %38 : vector<64x128xi1>, vector<64x128xf32>
    %48 = arith.mulf %47, %47 : vector<64x128xf32>
    %cst_18 = arith.constant dense<0.000000e+00> : vector<64xf32>
    %49 = vector.multi_reduction <add>, %48, %cst_18 [1] : vector<64x128xf32> to vector<64xf32>
    %50 = vector.shape_cast %49 : vector<64xf32> to vector<64x1xf32>
    %cst_19 = arith.constant 1.000000e-30 : f32
    %51 = vector.broadcast %cst_19 : f32 to vector<64x1xf32>
    %52 = arith.maximumf %50, %51 : vector<64x1xf32>
    %53 = math.rsqrt %52 : vector<64x1xf32>
    %54 = arith.mulf %52, %53 : vector<64x1xf32>
    %cst_20 = arith.constant 0.995999991 : f32
    %55 = vector.broadcast %cst_20 : f32 to vector<64x1xf32>
    %56 = arith.cmpf ogt, %54, %55 : vector<64x1xf32>
    %cst_21 = arith.constant 0.995999991 : f32
    %57 = vector.broadcast %cst_21 : f32 to vector<64x1xf32>
    %58 = arith.mulf %53, %57 : vector<64x1xf32>
    %59 = vector.broadcast %58 : vector<64x1xf32> to vector<64x128xf32>
    %60 = arith.mulf %47, %59 : vector<64x128xf32>
    %61 = vector.shape_cast %56 : vector<64x1xi1> to vector<64x1xi1>
    %62 = vector.broadcast %61 : vector<64x1xi1> to vector<64x128xi1>
    %63 = arith.select %62, %60, %47 : vector<64x128xi1>, vector<64x128xf32>
    %64 = arith.mulf %2, %2 : vector<1x128xf32>
    %cst_22 = arith.constant dense<0.000000e+00> : vector<1xf32>
    %65 = vector.multi_reduction <add>, %64, %cst_22 [1] : vector<1x128xf32> to vector<1xf32>
    %66 = vector.shape_cast %65 : vector<1xf32> to vector<1x1xf32>
    %cst_23 = arith.constant 1.000000e-30 : f32
    %67 = vector.broadcast %cst_23 : f32 to vector<1x1xf32>
    %68 = arith.maximumf %66, %67 : vector<1x1xf32>
    %69 = math.rsqrt %68 : vector<1x1xf32>
    %70 = arith.mulf %68, %69 : vector<1x1xf32>
    %cst_24 = arith.constant 1.000000e+00 : f32
    %71 = vector.broadcast %cst_24 : f32 to vector<1x1xf32>
    %72 = arith.mulf %71, %70 : vector<1x1xf32>
    %73 = math.tanh %72 : vector<1x1xf32>
    %74 = arith.mulf %73, %69 : vector<1x1xf32>
    %cst_25 = arith.constant 1.000000e+00 : f32
    %75 = vector.broadcast %cst_25 : f32 to vector<1x1xf32>
    %76 = arith.mulf %74, %75 : vector<1x1xf32>
    %77 = vector.broadcast %76 : vector<1x1xf32> to vector<1x128xf32>
    %78 = arith.mulf %77, %2 : vector<1x128xf32>
    %79 = arith.mulf %78, %78 : vector<1x128xf32>
    %cst_26 = arith.constant dense<0.000000e+00> : vector<1xf32>
    %80 = vector.multi_reduction <add>, %79, %cst_26 [1] : vector<1x128xf32> to vector<1xf32>
    %81 = vector.shape_cast %80 : vector<1xf32> to vector<1x1xf32>
    %cst_27 = arith.constant 1.000000e-30 : f32
    %82 = vector.broadcast %cst_27 : f32 to vector<1x1xf32>
    %83 = arith.maximumf %81, %82 : vector<1x1xf32>
    %84 = math.rsqrt %83 : vector<1x1xf32>
    %85 = arith.mulf %83, %84 : vector<1x1xf32>
    %cst_28 = arith.constant 0.995999991 : f32
    %86 = vector.broadcast %cst_28 : f32 to vector<1x1xf32>
    %87 = arith.cmpf ogt, %85, %86 : vector<1x1xf32>
    %cst_29 = arith.constant 0.995999991 : f32
    %88 = vector.broadcast %cst_29 : f32 to vector<1x1xf32>
    %89 = arith.mulf %84, %88 : vector<1x1xf32>
    %90 = vector.broadcast %89 : vector<1x1xf32> to vector<1x128xf32>
    %91 = arith.mulf %78, %90 : vector<1x128xf32>
    %92 = vector.shape_cast %87 : vector<1x1xi1> to vector<1x1xi1>
    %93 = vector.broadcast %92 : vector<1x1xi1> to vector<1x128xi1>
    %94 = arith.select %93, %91, %78 : vector<1x128xi1>, vector<1x128xf32>
    %95 = arith.mulf %63, %63 : vector<64x128xf32>
    %cst_30 = arith.constant dense<0.000000e+00> : vector<64xf32>
    %96 = vector.multi_reduction <add>, %95, %cst_30 [1] : vector<64x128xf32> to vector<64xf32>
    %97 = vector.shape_cast %96 : vector<64xf32> to vector<64x1xf32>
    %98 = arith.mulf %94, %94 : vector<1x128xf32>
    %cst_31 = arith.constant dense<0.000000e+00> : vector<1xf32>
    %99 = vector.multi_reduction <add>, %98, %cst_31 [1] : vector<1x128xf32> to vector<1xf32>
    %100 = vector.shape_cast %99 : vector<1xf32> to vector<1x1xf32>
    %101 = vector.broadcast %94 : vector<1x128xf32> to vector<64x128xf32>
    %102 = arith.mulf %63, %101 : vector<64x128xf32>
    %cst_32 = arith.constant dense<0.000000e+00> : vector<64xf32>
    %103 = vector.multi_reduction <add>, %102, %cst_32 [1] : vector<64x128xf32> to vector<64xf32>
    %104 = vector.shape_cast %103 : vector<64xf32> to vector<64x1xf32>
    %cst_33 = arith.constant 2.000000e+00 : f32
    %105 = vector.broadcast %cst_33 : f32 to vector<64x1xf32>
    %106 = arith.mulf %105, %104 : vector<64x1xf32>
    %cst_34 = arith.constant 1.000000e+00 : f32
    %107 = vector.broadcast %cst_34 : f32 to vector<64x1xf32>
    %108 = arith.addf %107, %106 : vector<64x1xf32>
    %cst_35 = arith.constant 1.000000e+00 : f32
    %109 = vector.broadcast %cst_35 : f32 to vector<1x1xf32>
    %110 = arith.mulf %109, %100 : vector<1x1xf32>
    %111 = vector.broadcast %110 : vector<1x1xf32> to vector<64x1xf32>
    %112 = arith.addf %108, %111 : vector<64x1xf32>
    %113 = vector.broadcast %112 : vector<64x1xf32> to vector<64x128xf32>
    %114 = arith.mulf %113, %63 : vector<64x128xf32>
    %cst_36 = arith.constant 1.000000e+00 : f32
    %115 = vector.broadcast %cst_36 : f32 to vector<64x1xf32>
    %116 = arith.mulf %115, %97 : vector<64x1xf32>
    %cst_37 = arith.constant 1.000000e+00 : f32
    %117 = vector.broadcast %cst_37 : f32 to vector<64x1xf32>
    %118 = arith.subf %117, %116 : vector<64x1xf32>
    %119 = vector.broadcast %118 : vector<64x1xf32> to vector<64x128xf32>
    %120 = vector.broadcast %94 : vector<1x128xf32> to vector<64x128xf32>
    %121 = arith.mulf %119, %120 : vector<64x128xf32>
    %122 = arith.addf %114, %121 : vector<64x128xf32>
    %cst_38 = arith.constant 2.000000e+00 : f32
    %123 = vector.broadcast %cst_38 : f32 to vector<64x1xf32>
    %124 = arith.mulf %123, %104 : vector<64x1xf32>
    %cst_39 = arith.constant 1.000000e+00 : f32
    %125 = vector.broadcast %cst_39 : f32 to vector<64x1xf32>
    %126 = arith.addf %125, %124 : vector<64x1xf32>
    %cst_40 = arith.constant 1.000000e+00 : f32
    %127 = vector.broadcast %cst_40 : f32 to vector<64x1xf32>
    %128 = arith.mulf %127, %97 : vector<64x1xf32>
    %129 = vector.broadcast %100 : vector<1x1xf32> to vector<64x1xf32>
    %130 = arith.mulf %128, %129 : vector<64x1xf32>
    %131 = arith.addf %126, %130 : vector<64x1xf32>
    %cst_41 = arith.constant 1.000000e-15 : f32
    %132 = vector.broadcast %cst_41 : f32 to vector<64x1xf32>
    %133 = arith.maximumf %131, %132 : vector<64x1xf32>
    %134 = tpu.reciprocal %133 {approx = true} : vector<64x1xf32> -> vector<64x1xf32>
    %135 = vector.broadcast %134 : vector<64x1xf32> to vector<64x128xf32>
    %136 = arith.mulf %122, %135 : vector<64x128xf32>
    %137 = arith.mulf %136, %136 : vector<64x128xf32>
    %cst_42 = arith.constant dense<0.000000e+00> : vector<64xf32>
    %138 = vector.multi_reduction <add>, %137, %cst_42 [1] : vector<64x128xf32> to vector<64xf32>
    %139 = vector.shape_cast %138 : vector<64xf32> to vector<64x1xf32>
    %cst_43 = arith.constant 1.000000e-30 : f32
    %140 = vector.broadcast %cst_43 : f32 to vector<64x1xf32>
    %141 = arith.maximumf %139, %140 : vector<64x1xf32>
    %142 = math.rsqrt %141 : vector<64x1xf32>
    %143 = arith.mulf %141, %142 : vector<64x1xf32>
    %cst_44 = arith.constant 0.995999991 : f32
    %144 = vector.broadcast %cst_44 : f32 to vector<64x1xf32>
    %145 = arith.cmpf ogt, %143, %144 : vector<64x1xf32>
    %cst_45 = arith.constant 0.995999991 : f32
    %146 = vector.broadcast %cst_45 : f32 to vector<64x1xf32>
    %147 = arith.mulf %142, %146 : vector<64x1xf32>
    %148 = vector.broadcast %147 : vector<64x1xf32> to vector<64x128xf32>
    %149 = arith.mulf %136, %148 : vector<64x128xf32>
    %150 = vector.shape_cast %145 : vector<64x1xi1> to vector<64x1xi1>
    %151 = vector.broadcast %150 : vector<64x1xi1> to vector<64x128xi1>
    %152 = arith.select %151, %149, %136 : vector<64x128xi1>, vector<64x128xf32>
    %153 = arith.mulf %152, %152 : vector<64x128xf32>
    %cst_46 = arith.constant dense<0.000000e+00> : vector<64xf32>
    %154 = vector.multi_reduction <add>, %153, %cst_46 [1] : vector<64x128xf32> to vector<64xf32>
    %155 = vector.shape_cast %154 : vector<64xf32> to vector<64x1xf32>
    %cst_47 = arith.constant 1.000000e-30 : f32
    %156 = vector.broadcast %cst_47 : f32 to vector<64x1xf32>
    %157 = arith.maximumf %155, %156 : vector<64x1xf32>
    %158 = math.rsqrt %157 : vector<64x1xf32>
    %159 = arith.mulf %157, %158 : vector<64x1xf32>
    %cst_48 = arith.constant 1.000000e+00 : f32
    %160 = vector.broadcast %cst_48 : f32 to vector<64x1xf32>
    %161 = arith.mulf %160, %159 : vector<64x1xf32>
    %cst_49 = arith.constant -0.99999988 : f32
    %cst_50 = arith.constant 0.99999988 : f32
    %162 = vector.broadcast %cst_49 : f32 to vector<64x1xf32>
    %163 = arith.maximumf %162, %161 : vector<64x1xf32>
    %164 = vector.broadcast %cst_50 : f32 to vector<64x1xf32>
    %165 = arith.minimumf %164, %163 : vector<64x1xf32>
    %166 = math.log1p %165 : vector<64x1xf32>
    %cst_51 = arith.constant 0.000000e+00 : f32
    %167 = vector.broadcast %cst_51 : f32 to vector<64x1xf32>
    %168 = arith.subf %167, %165 : vector<64x1xf32>
    %169 = math.log1p %168 : vector<64x1xf32>
    %170 = arith.subf %166, %169 : vector<64x1xf32>
    %cst_52 = arith.constant 5.000000e-01 : f32
    %171 = vector.broadcast %cst_52 : f32 to vector<64x1xf32>
    %172 = arith.mulf %171, %170 : vector<64x1xf32>
    %173 = arith.mulf %172, %158 : vector<64x1xf32>
    %cst_53 = arith.constant 1.000000e+00 : f32
    %174 = vector.broadcast %cst_53 : f32 to vector<64x1xf32>
    %175 = arith.mulf %173, %174 : vector<64x1xf32>
    %176 = vector.broadcast %175 : vector<64x1xf32> to vector<64x128xf32>
    %177 = arith.mulf %176, %152 : vector<64x128xf32>
    %c0_54 = arith.constant 0 : index
    %c0_55 = arith.constant 0 : index
    %178 = vector.load %arg4[%c0_54, %c0_55] : memref<64x128xf32, #tpu.memory_space<vmem>>, vector<64x128xf32>
    tpu.vector_store %arg4[%c0_54, %c0_55], %177 {strides = array<i32>} : memref<64x128xf32, #tpu.memory_space<vmem>>, vector<64x128xf32>,
    return
  }
  func.func @transform_0(%arg0: i32) -> (i32, i32) {
    %c0_i32 = arith.constant 0 : i32
    %c0_i32_0 = arith.constant 0 : i32
    return %arg0, %c0_i32 : i32, i32
  }
  func.func @transform_1(%arg0: i32) -> (i32, i32) {
    %c0_i32 = arith.constant 0 : i32
    %c0_i32_0 = arith.constant 0 : i32
    %c0_i32_1 = arith.constant 0 : i32
    return %c0_i32, %c0_i32_0 : i32, i32
  }
  func.func @transform_2(%arg0: i32) -> (i32, i32) {
    %c0_i32 = arith.constant 0 : i32
    %c0_i32_0 = arith.constant 0 : i32
    %c0_i32_1 = arith.constant 0 : i32
    return %c0_i32, %c0_i32_0 : i32, i32
  }
  func.func @transform_3(%arg0: i32) -> (i32, i32) {
    %c0_i32 = arith.constant 0 : i32
    %c0_i32_0 = arith.constant 0 : i32
    return %arg0, %c0_i32 : i32, i32
  }
}

</mosaic_0001>

<llo_original>
// kernel: tpu_custom_call.1
$region0: #{tpu_custom_call.1}
  #allocation0 [shape = 'u32[]', space=smem, size = 0x4, offset = 0x4, fixed_abs, tag = 'smem constant byte address 0x4 - core index']
  #allocation1 [shape = 'u32[144,128]{1,0:T(1,128)}', space=vmem, size = 0x12000, scoped, tag = 'internal scratch']
  %s0 = inlined_call_operand.vmem [shape: f32[256,64], index: 0, kind: input, shape index: {}]
  %s1 = inlined_call_operand.vmem [shape: f32[64,128], index: 1, kind: input, shape index: {}]
  %s2 = inlined_call_operand.vmem [shape: f32[1,128], index: 2, kind: input, shape index: {}]
  %s3 = inlined_call_operand.hbm [shape: f32[256,128], index: 3, kind: output, shape index: {}]
  %s4 = sld [smem:[#allocation0]]
  $region45: #{tpu_custom_call.1} parent=0
    _
  %s6 = ssub.s32 1, %s4
  %s7 = scalar_select 0, %s6, %s4
  $region1: #{tpu_custom_call.1} parent=0
    #allocation2 [shape = 'u8[65536]{0}', space=vmem, size = 0x10000, scoped, tag = 'output window, operand 0']
    #allocation3 [shape = 's32[2]{0}', space=sflag, size = 0x8, scoped, tag = 'scoped memory for tpu_custom_call.1']
    %8 = vsyncpa [#allocation3], 0
    %s9 = scalar_lea.sflag [#allocation3], 1
    %10 = vsyncpa %s9, 0
    loop: start=0, step=1, limit=6
    $region2: #{tpu_custom_call.1} parent=1 // loop_pre_header
      _
    $region3: #{tpu_custom_call.1} parent=1 // loop_header
      %s12 = sphi 0, %s16
      %p13 = scmp.ge.s32.totalorder %s12, 6
      %s22 = sphi 0, %s24
      %s25 = sphi 0, %s22
      %s26 = sphi 0, %s25
      %s42 = sphi 0, %s26
      %s46 = sphi 0, %s46
      %s48 = sphi 0, %s46
      %s49 = sphi 0, %s48
      %s63 = sphi 0, %s49
      %s67 = sphi 0, %s67
      %s69 = sphi 0, %s67
      %s70 = sphi 0, %s69
      %s84 = sphi 0, %s70
      %s90 = sphi 0, %s92
      %s93 = sphi 0, %s90
      %s94 = sphi 0, %s93
      %s110 = sphi 0, %s94
    $region4: #{tpu_custom_call.1} parent=1 // loop_header_branch
      %15 = sbr.rel (%p13) target = $region8
    $region5: #{tpu_custom_call.1} parent=1 // loop_body
      %s17 = ssub.s32 %s12, 1
      %s18 = ssub.s32 %s12, 2
      %s19 = sadd.s32 %s12, 1
      %s20 = ssub.s32 %s12, %s19
      %p21 = scmp.eq.s32.totalorder %s20, 0
      %s23 = sadd.s32 %s22, 1
      %s24 = scalar_select %p21, %s22, %s23
      %p27 = pneg %p21
      %p28 = scmp.eq.s32.totalorder %s12, 3
      %p29 = por %p27, %p28
      %p30 = scmp.ne.s32.totalorder %s22, %s25
      %p31 = scmp.eq.s32.totalorder %s12, 0
      %p32 = por %p30, %p31
      %p33 = scmp.ne.s32.totalorder %s22, %s25
      %p34 = scmp.eq.s32.totalorder %s17, 3
      %p35 = por %p33, %p34
      %p36 = scmp.ne.s32.totalorder %s25, %s26
      %p37 = scmp.eq.s32.totalorder %s17, 0
      %p38 = por %p36, %p37
      %p39 = scmp.ne.s32.totalorder %s25, %s26
      %p40 = scmp.eq.s32.totalorder %s18, 3
      %p41 = por %p39, %p40
      %p43 = scmp.ne.s32.totalorder %s26, %s42
      %p44 = scmp.eq.s32.totalorder %s18, 0
      %p45 = por %p43, %p44
      %s47 = sadd.s32 %s46, 1
      %p50 = scmp.eq.s32.totalorder %s12, 3
      %p51 = scmp.ne.s32.totalorder %s46, %s48
      %p52 = scmp.eq.s32.totalorder %s12, 0
      %p53 = por %p51, %p52
      %p54 = scmp.ne.s32.totalorder %s46, %s48
      %p55 = scmp.eq.s32.totalorder %s17, 3
      %p56 = por %p54, %p55
      %p57 = scmp.ne.s32.totalorder %s48, %s49
      %p58 = scmp.eq.s32.totalorder %s17, 0
      %p59 = por %p57, %p58
      %p60 = scmp.ne.s32.totalorder %s48, %s49
      %p61 = scmp.eq.s32.totalorder %s18, 3
      %p62 = por %p60, %p61
      %p64 = scmp.ne.s32.totalorder %s49, %s63
      %p65 = scmp.eq.s32.totalorder %s18, 0
      %p66 = por %p64, %p65
      %s68 = sadd.s32 %s67, 1
      %p71 = scmp.eq.s32.totalorder %s12, 3
      %p72 = scmp.ne.s32.totalorder %s67, %s69
      %p73 = scmp.eq.s32.totalorder %s12, 0
      %p74 = por %p72, %p73
      %p75 = scmp.ne.s32.totalorder %s67, %s69
      %p76 = scmp.eq.s32.totalorder %s17, 3
      %p77 = por %p75, %p76
      %p78 = scmp.ne.s32.totalorder %s69, %s70
      %p79 = scmp.eq.s32.totalorder %s17, 0
      %p80 = por %p78, %p79
      %p81 = scmp.ne.s32.totalorder %s69, %s70
      %p82 = scmp.eq.s32.totalorder %s18, 3
      %p83 = por %p81, %p82
      %p85 = scmp.ne.s32.totalorder %s70, %s84
      %p86 = scmp.eq.s32.totalorder %s18, 0
      %p87 = por %p85, %p86
      %s88 = ssub.s32 %s12, %s19
      %p89 = scmp.eq.s32.totalorder %s88, 0
      %s91 = sadd.s32 %s90, 1
      %s92 = scalar_select %p89, %s90, %s91
      %p95 = pneg %p89
      %p96 = scmp.eq.s32.totalorder %s12, 3
      %p97 = por %p95, %p96
      %p98 = scmp.ne.s32.totalorder %s90, %s93
      %p99 = scmp.eq.s32.totalorder %s12, 0
      %p100 = por %p98, %p99
      %p101 = scmp.ne.s32.totalorder %s90, %s93
      %p102 = scmp.eq.s32.totalorder %s17, 3
      %p103 = por %p101, %p102
      %p104 = scmp.ne.s32.totalorder %s93, %s94
      %p105 = scmp.eq.s32.totalorder %s17, 0
      %p106 = por %p104, %p105
      %p107 = scmp.ne.s32.totalorder %s93, %s94
      %p108 = scmp.eq.s32.totalorder %s18, 3
      %p109 = por %p107, %p108
      %p111 = scmp.ne.s32.totalorder %s94, %s110
      %p112 = scmp.eq.s32.totalorder %s18, 0
      %p113 = por %p111, %p112
      %p114 = scmp.le.s32.totalorder 1, %s12
      %p115 = scmp.lt.s32.totalorder %s12, 5
      %p116 = pnand %p114, %p115
      %p117 = pneg %p116
      // Predicated region
      $region9: #{tpu_custom_call.1} parent=5 // pred_check
        _
      $region10: #{tpu_custom_call.1} parent=5 // pred_check_branch
        %119 = sbr.rel (%p116) target = $region12
      $region11: #{tpu_custom_call.1} parent=5 // pred_region
        %s120 = ssub.s32 %s12, 1
        // Predicated region
        $region13: #{tpu_custom_call.1} parent=11 // pred_check
          %p121 = pneg %p59
        $region14: #{tpu_custom_call.1} parent=11 // pred_check_branch
          %123 = sbr.rel (%p121) target = $region16
        $region15: #{tpu_custom_call.1} parent=11 // pred_region
          _
        $region16: #{tpu_custom_call.1} parent=11 // pred_fallthru
          _
        // Predicated region
        $region17: #{tpu_custom_call.1} parent=11 // pred_check
          %p124 = pneg %p80
        $region18: #{tpu_custom_call.1} parent=11 // pred_check_branch
          %126 = sbr.rel (%p124) target = $region20
        $region19: #{tpu_custom_call.1} parent=11 // pred_region
          _
        $region20: #{tpu_custom_call.1} parent=11 // pred_fallthru
          _
      $region12: #{tpu_custom_call.1} parent=5 // pred_fallthru
        _
      %p127 = scmp.lt.s32.totalorder %s12, 4
      // Predicated region
      $region21: #{tpu_custom_call.1} parent=5 // pred_check
        %p128 = pneg %p127
      $region22: #{tpu_custom_call.1} parent=5 // pred_check_branch
        %130 = sbr.rel (%p128) target = $region24
      $region23: #{tpu_custom_call.1} parent=5 // pred_region
        // Predicated region
        $region25: #{tpu_custom_call.1} parent=23 // pred_check
          %p131 = pneg %p32
        $region26: #{tpu_custom_call.1} parent=23 // pred_check_branch
          %133 = sbr.rel (%p131) target = $region28
        $region27: #{tpu_custom_call.1} parent=23 // pred_region
          %s134 = smul.u32 8, %s12
          %p135 = scmp.lt.s32.totalorder %s134, 31
          %s136 = scalar_select %p135, %s134, 31
          %s137 = smul.addr %s136, 8
          %s138 = scalar_lea.vmem %s0, %s137
          %s139 = smul.u32 8, %s12
        $region28: #{tpu_custom_call.1} parent=23 // pred_fallthru
          _
      $region24: #{tpu_custom_call.1} parent=5 // pred_fallthru
        _
      %p140 = scmp.le.s32.totalorder 1, %s12
      %p141 = scmp.lt.s32.totalorder %s12, 5
      %p142 = pnand %p140, %p141
      %p143 = pneg %p142
      // Predicated region
      $region29: #{tpu_custom_call.1} parent=5 // pred_check
        _
      $region30: #{tpu_custom_call.1} parent=5 // pred_check_branch
        %145 = sbr.rel (%p142) target = $region32
      $region31: #{tpu_custom_call.1} parent=5 // pred_region
        %s146 = ssub.s32 %s12, 1
        %s147 = smul.u32 8, %s17
        %p148 = scmp.lt.s32.totalorder %s147, 31
        %s149 = scalar_select %p148, %s147, 31
        %s150 = smul.addr %s149, 8
        %s151 = scalar_lea.vmem %s0, %s150
        %p152 = pneg %p38
        %p153 = pneg %p35
        %p154 = pneg %p59
        %p155 = pneg %p56
        %p156 = pneg %p80
        %p157 = pneg %p77
        %p158 = pneg %p106
        %p159 = pneg %p103
        %s160 = sand.u32 %s93, 1
        %s161 = scalar_lea.sflag [#allocation3], %s160
        %s162 = sand.u32 %s93, 1
        %s163 = smul.addr %s162, 64
        %s164 = scalar_lea.vmem [#allocation2], %s163
        %s165 = smul.u32 8, %s17
        %p166 = scmp.lt.s32.totalorder %s165, 31
        %s167 = scalar_select %p166, %s165, 31
        %s168 = smul.addr %s167, 8
        %s169 = scalar_lea.vmem %s0, %s168
        %s170 = smul.u32 8, %s17
        %s171 = smul.u32 8, %s17
        %v172 = vld [vmem:[%s169] sm:$0xff]
        %v173 = vld [vmem:[%s169 + $0x8] sm:$0xff]
        %v174 = vld [vmem:[%s169 + $0x10] sm:$0xff]
        %v175 = vld [vmem:[%s169 + $0x18] sm:$0xff]
        %v176 = vld [vmem:[%s169 + $0x20] sm:$0xff]
        %v177 = vld [vmem:[%s169 + $0x28] sm:$0xff]
        %v178 = vld [vmem:[%s169 + $0x30] sm:$0xff]
        %v179 = vld [vmem:[%s169 + $0x38] sm:$0xff]
        %v180 = vld [vmem:[%s1] sm:$0xff]
        %v181 = vld [vmem:[%s1 + $0x8] sm:$0xff]
        %v182 = vld [vmem:[%s1 + $0x10] sm:$0xff]
        %v183 = vld [vmem:[%s1 + $0x18] sm:$0xff]
        %v184 = vld [vmem:[%s1 + $0x20] sm:$0xff]
        %v185 = vld [vmem:[%s1 + $0x28] sm:$0xff]
        %v186 = vld [vmem:[%s1 + $0x30] sm:$0xff]
        %v187 = vld [vmem:[%s1 + $0x38] sm:$0xff]
        %v188 = vld [vmem:[%s2] sm:$0x1]
        %v189 = vmul.f32 %v172, %v172
        %v190 = vmul.f32 %v173, %v173
        %v191 = vmul.f32 %v174, %v174
        %v192 = vmul.f32 %v175, %v175
        %v193 = vmul.f32 %v176, %v176
        %v194 = vmul.f32 %v177, %v177
        %v195 = vmul.f32 %v178, %v178
        %v196 = vmul.f32 %v179, %v179
        %vm197 = vcmask 523264
        %v198 = vsel %vm197, %v189, 0.0
        %199 = vadd.xlane.f32.xlu0 %v198
        %v200 = vpop.xlane.xlu0 %199
        %v201 = vsel %vm197, %v190, 0.0
        %202 = vadd.xlane.f32.xlu0 %v201
        %v203 = vpop.xlane.xlu0 %202
        %v204 = vsel %vm197, %v191, 0.0
        %205 = vadd.xlane.f32.xlu0 %v204
        %v206 = vpop.xlane.xlu0 %205
        %v207 = vsel %vm197, %v192, 0.0
        %208 = vadd.xlane.f32.xlu0 %v207
        %v209 = vpop.xlane.xlu0 %208
        %v210 = vsel %vm197, %v193, 0.0
        %211 = vadd.xlane.f32.xlu0 %v210
        %v212 = vpop.xlane.xlu0 %211
        %v213 = vsel %vm197, %v194, 0.0
        %214 = vadd.xlane.f32.xlu0 %v213
        %v215 = vpop.xlane.xlu0 %214
        %v216 = vsel %vm197, %v195, 0.0
        %217 = vadd.xlane.f32.xlu0 %v216
        %v218 = vpop.xlane.xlu0 %217
        %v219 = vsel %vm197, %v196, 0.0
        %220 = vadd.xlane.f32.xlu0 %v219
        %v221 = vpop.xlane.xlu0 %220
        %v222 = vmax.f32 %v200, 1e-30
        %v223 = vmax.f32 %v203, 1e-30
        %v224 = vmax.f32 %v206, 1e-30
        %v225 = vmax.f32 %v209, 1e-30
        %v226 = vmax.f32 %v212, 1e-30
        %v227 = vmax.f32 %v215, 1e-30
        %v228 = vmax.f32 %v218, 1e-30
        %v229 = vmax.f32 %v221, 1e-30
        %v230 = vrsqrt.pop %v222
        %v231 = vrsqrt.pop %v223
        %v232 = vrsqrt.pop %v224
        %v233 = vrsqrt.pop %v225
        %v234 = vrsqrt.pop %v226
        %v235 = vrsqrt.pop %v227
        %v236 = vrsqrt.pop %v228
        %v237 = vrsqrt.pop %v229
        %v238 = vmul.f32 %v222, %v230
        %v239 = vmul.f32 %v223, %v231
        %v240 = vmul.f32 %v224, %v232
        %v241 = vmul.f32 %v225, %v233
        %v242 = vmul.f32 %v226, %v234
        %v243 = vmul.f32 %v227, %v235
        %v244 = vmul.f32 %v228, %v236
        %v245 = vmul.f32 %v229, %v237
        %v247 = vsel %vm197, %v172, 0
        %v250 = vsel %vm197, %v173, 0
        %v253 = vsel %vm197, %v174, 0
        %v256 = vsel %vm197, %v175, 0
        %v259 = vsel %vm197, %v176, 0
        %v262 = vsel %vm197, %v177, 0
        %v265 = vsel %vm197, %v178, 0
        %v268 = vsel %vm197, %v179, 0
        %270 = vmatprep.subr.mxu0 0.0
        %271 = vmatpush1.msra.mxu0 %v180
        %272 = vmatprep.subr.mxu0 0.0
        %273 = vmatpush1.msra.mxu0 %v181
        %274 = vmatprep.subr.mxu0 0.0
        %275 = vmatpush1.msra.mxu0 %v182
        %276 = vmatprep.subr.mxu0 0.0
        %277 = vmatpush1.msra.mxu0 %v183
        %278 = vmatprep.subr.mxu0 0.0
        %279 = vmatpush1.msra.mxu0 %v184
        %280 = vmatprep.subr.mxu0 0.0
        %281 = vmatpush1.msra.mxu0 %v185
        %282 = vmatprep.subr.mxu0 0.0
        %283 = vmatpush1.msra.mxu0 %v186
        %284 = vmatprep.subr.mxu0 0.0
        %285 = vmatpush1.msra.mxu0 %v187
        %286 = vmatprep.subr.mxu0 0.0
        %287 = vmatpush1.msra.mxu0 0.0
        %288 = vmatprep.subr.mxu0 0.0
        %289 = vmatpush1.msra.mxu0 0.0
        %290 = vmatprep.subr.mxu0 0.0
        %291 = vmatpush1.msra.mxu0 0.0
        %292 = vmatprep.subr.mxu0 0.0
        %293 = vmatpush1.msra.mxu0 0.0
        %294 = vmatprep.subr.mxu0 0.0
        %295 = vmatpush1.msra.mxu0 0.0
        %296 = vmatprep.subr.mxu0 0.0
        %297 = vmatpush1.msra.mxu0 0.0
        %298 = vmatprep.subr.mxu0 0.0
        %299 = vmatpush1.msra.mxu0 0.0
        %300 = vmatprep.subr.mxu0 0.0
        %301 = vmatpush1.msra.mxu0 0.0
        %302 = vmatprep.subr.mxu0 0.0
        %303 = vmatpush1.msra.mxu0 0.0
        %304 = vmatprep.subr.mxu0 0.0
        %305 = vmatpush1.msra.mxu0 0.0
        %306 = vmatprep.subr.mxu0 0.0
        %307 = vmatpush1.msra.mxu0 0.0
        %308 = vmatprep.subr.mxu0 0.0
        %309 = vmatpush1.msra.mxu0 0.0
        %310 = vmatprep.subr.mxu0 0.0
        %311 = vmatpush1.msra.mxu0 0.0
        %312 = vmatprep.subr.mxu0 0.0
        %313 = vmatpush1.msra.mxu0 0.0
        %314 = vmatprep.subr.mxu0 0.0
        %315 = vmatpush1.msra.mxu0 0.0
        %316 = vmatprep.subr.mxu0 0.0
        %317 = vmatpush1.msra.mxu0 0.0
        %318 = vmatprep.subr.mxu0 0.0
        %319 = vmatpush1.msra.mxu0 0.0
        %320 = vmatprep.subr.mxu0 0.0
        %321 = vmatpush1.msra.mxu0 0.0
        %322 = vmatprep.subr.mxu0 0.0
        %323 = vmatpush1.msra.mxu0 0.0
        %324 = vmatprep.subr.mxu0 0.0
        %325 = vmatpush1.msra.mxu0 0.0
        %326 = vmatprep.subr.mxu0 0.0
        %327 = vmatpush1.msra.mxu0 0.0
        %328 = vmatprep.subr.mxu0 0.0
        %329 = vmatpush1.msra.mxu0 0.0
        %330 = vmatprep.subr.mxu0 0.0
        %331 = vmatpush1.msra.mxu0 0.0
        %332 = vmatprep.subr.mxu0 0.0
        %333 = vmatpush1.msra.mxu0 0.0
        %334 = vmatprep.mubr.f32.mxu0 0.0
        %335 = vmatmul.mubr.f32.gmra.mrb[0].mxu0 %v247
        %v336 = vpop.f32.mrb[0].mxu0
        %v337 = vadd.f32 0.0, %v336
        %v338 = vpop.f32.mrb[0].mxu0
        %339 = vmatprep.mubr.f32.mxu0 0.0
        %340 = vmatmul.mubr.f32.gmra.mrb[0].mxu0 %v250
        %v341 = vpop.f32.mrb[0].mxu0
        %v342 = vadd.f32 0.0, %v341
        %v343 = vpop.f32.mrb[0].mxu0
        %344 = vmatprep.mubr.f32.mxu0 0.0
        %345 = vmatmul.mubr.f32.gmra.mrb[0].mxu0 %v253
        %v346 = vpop.f32.mrb[0].mxu0
        %v347 = vadd.f32 0.0, %v346
        %v348 = vpop.f32.mrb[0].mxu0
        %349 = vmatprep.mubr.f32.mxu0 0.0
        %350 = vmatmul.mubr.f32.gmra.mrb[0].mxu0 %v256
        %v351 = vpop.f32.mrb[0].mxu0
        %v352 = vadd.f32 0.0, %v351
        %v353 = vpop.f32.mrb[0].mxu0
        %354 = vmatprep.mubr.f32.mxu0 0.0
        %355 = vmatmul.mubr.f32.gmra.mrb[0].mxu0 %v259
        %v356 = vpop.f32.mrb[0].mxu0
        %v357 = vadd.f32 0.0, %v356
        %v358 = vpop.f32.mrb[0].mxu0
        %359 = vmatprep.mubr.f32.mxu0 0.0
        %360 = vmatmul.mubr.f32.gmra.mrb[0].mxu0 %v262
        %v361 = vpop.f32.mrb[0].mxu0
        %v362 = vadd.f32 0.0, %v361
        %v363 = vpop.f32.mrb[0].mxu0
        %364 = vmatprep.mubr.f32.mxu0 0.0
        %365 = vmatmul.mubr.f32.gmra.mrb[0].mxu0 %v265
        %v366 = vpop.f32.mrb[0].mxu0
        %v367 = vadd.f32 0.0, %v366
        %v368 = vpop.f32.mrb[0].mxu0
        %369 = vmatprep.mubr.f32.mxu0 0.0
        %370 = vmatmul.mubr.f32.gmra.mrb[0].mxu0 %v268
        %v371 = vpop.f32.mrb[0].mxu0
        %v372 = vadd.f32 0.0, %v371
        %v373 = vpop.f32.mrb[0].mxu0
        %374 = vdwg.mxu0
        %v375 = vmul.f32 %v337, %v337
        %v376 = vmul.f32 %v342, %v342
        %v377 = vmul.f32 %v347, %v347
        %v378 = vmul.f32 %v352, %v352
        %v379 = vmul.f32 %v357, %v357
        %v380 = vmul.f32 %v362, %v362
        %v381 = vmul.f32 %v367, %v367
        %v382 = vmul.f32 %v372, %v372
        %383 = vadd.xlane.f32.xlu0 %v375
        %v384 = vpop.xlane.xlu0 %383
        %385 = vadd.xlane.f32.xlu0 %v376
        %v386 = vpop.xlane.xlu0 %385
        %387 = vadd.xlane.f32.xlu0 %v377
        %v388 = vpop.xlane.xlu0 %387
        %389 = vadd.xlane.f32.xlu0 %v378
        %v390 = vpop.xlane.xlu0 %389
        %391 = vadd.xlane.f32.xlu0 %v379
        %v392 = vpop.xlane.xlu0 %391
        %393 = vadd.xlane.f32.xlu0 %v380
        %v394 = vpop.xlane.xlu0 %393
        %395 = vadd.xlane.f32.xlu0 %v381
        %v396 = vpop.xlane.xlu0 %395
        %397 = vadd.xlane.f32.xlu0 %v382
        %v398 = vpop.xlane.xlu0 %397
        %v399 = vmax.f32 %v384, 1e-30
        %v400 = vmax.f32 %v386, 1e-30
        %v401 = vmax.f32 %v388, 1e-30
        %v402 = vmax.f32 %v390, 1e-30
        %v403 = vmax.f32 %v392, 1e-30
        %v404 = vmax.f32 %v394, 1e-30
        %v405 = vmax.f32 %v396, 1e-30
        %v406 = vmax.f32 %v398, 1e-30
        %v407 = vrsqrt.pop %v399
        %v408 = vrsqrt.pop %v400
        %v409 = vrsqrt.pop %v401
        %v410 = vrsqrt.pop %v402
        %v411 = vrsqrt.pop %v403
        %v412 = vrsqrt.pop %v404
        %v413 = vrsqrt.pop %v405
        %v414 = vrsqrt.pop %v406
        %v415 = vmul.f32 %v399, %v407
        %v416 = vmul.f32 %v400, %v408
        %v417 = vmul.f32 %v401, %v409
        %v418 = vmul.f32 %v402, %v410
        %v419 = vmul.f32 %v403, %v411
        %v420 = vmul.f32 %v404, %v412
        %v421 = vmul.f32 %v405, %v413
        %v422 = vmul.f32 %v406, %v414
        %v423 = vmul.f32 %v415, %v230
        %v424 = vmul.f32 %v416, %v231
        %v425 = vmul.f32 %v417, %v232
        %v426 = vmul.f32 %v418, %v233
        %v427 = vmul.f32 %v419, %v234
        %v428 = vmul.f32 %v420, %v235
        %v429 = vmul.f32 %v421, %v236
        %v430 = vmul.f32 %v422, %v237
        %v431 = vmax.f32 %v238, -0.9999999
        %v432 = vmax.f32 %v239, -0.9999999
        %v433 = vmax.f32 %v240, -0.9999999
        %v434 = vmax.f32 %v241, -0.9999999
        %v435 = vmax.f32 %v242, -0.9999999
        %v436 = vmax.f32 %v243, -0.9999999
        %v437 = vmax.f32 %v244, -0.9999999
        %v438 = vmax.f32 %v245, -0.9999999
        %v439 = vmin.f32 %v431, 0.9999999
        %v440 = vmin.f32 %v432, 0.9999999
        %v441 = vmin.f32 %v433, 0.9999999
        %v442 = vmin.f32 %v434, 0.9999999
        %v443 = vmin.f32 %v435, 0.9999999
        %v444 = vmin.f32 %v436, 0.9999999
        %v445 = vmin.f32 %v437, 0.9999999
        %v446 = vmin.f32 %v438, 0.9999999
        %v447 = vadd.f32 %v439, 1.0
        %v448 = vlog2.pop %v447
        %v449 = vmul.f32 %v448, 0.6931472
        %v450 = vmul.f32 -0.5, %v439
        %v451 = vadd.f32 %v450, 1.0
        %v452 = vmul.f32 %v451, %v439
        %v453 = vand.u32 2147483647, %v439
        %vm454 = vcmp.lt.f32.partialorder %v453, 0.0004427343
        %v455 = vsel %vm454, %v452, %v449
        %v456 = vadd.f32 %v440, 1.0
        %v457 = vlog2.pop %v456
        %v458 = vmul.f32 %v457, 0.6931472
        %v459 = vmul.f32 -0.5, %v440
        %v460 = vadd.f32 %v459, 1.0
        %v461 = vmul.f32 %v460, %v440
        %v462 = vand.u32 2147483647, %v440
        %vm463 = vcmp.lt.f32.partialorder %v462, 0.0004427343
        %v464 = vsel %vm463, %v461, %v458
        %v465 = vadd.f32 %v441, 1.0
        %v466 = vlog2.pop %v465
        %v467 = vmul.f32 %v466, 0.6931472
        %v468 = vmul.f32 -0.5, %v441
        %v469 = vadd.f32 %v468, 1.0
        %v470 = vmul.f32 %v469, %v441
        %v471 = vand.u32 2147483647, %v441
        %vm472 = vcmp.lt.f32.partialorder %v471, 0.0004427343
        %v473 = vsel %vm472, %v470, %v467
        %v474 = vadd.f32 %v442, 1.0
        %v475 = vlog2.pop %v474
        %v476 = vmul.f32 %v475, 0.6931472
        %v477 = vmul.f32 -0.5, %v442
        %v478 = vadd.f32 %v477, 1.0
        %v479 = vmul.f32 %v478, %v442
        %v480 = vand.u32 2147483647, %v442
        %vm481 = vcmp.lt.f32.partialorder %v480, 0.0004427343
        %v482 = vsel %vm481, %v479, %v476
        %v483 = vadd.f32 %v443, 1.0
        %v484 = vlog2.pop %v483
        %v485 = vmul.f32 %v484, 0.6931472
        %v486 = vmul.f32 -0.5, %v443
        %v487 = vadd.f32 %v486, 1.0
        %v488 = vmul.f32 %v487, %v443
        %v489 = vand.u32 2147483647, %v443
        %vm490 = vcmp.lt.f32.partialorder %v489, 0.0004427343
        %v491 = vsel %vm490, %v488, %v485
        %v492 = vadd.f32 %v444, 1.0
        %v493 = vlog2.pop %v492
        %v494 = vmul.f32 %v493, 0.6931472
        %v495 = vmul.f32 -0.5, %v444
        %v496 = vadd.f32 %v495, 1.0
        %v497 = vmul.f32 %v496, %v444
        %v498 = vand.u32 2147483647, %v444
        %vm499 = vcmp.lt.f32.partialorder %v498, 0.0004427343
        %v500 = vsel %vm499, %v497, %v494
        %v501 = vadd.f32 %v445, 1.0
        %v502 = vlog2.pop %v501
        %v503 = vmul.f32 %v502, 0.6931472
        %v504 = vmul.f32 -0.5, %v445
        %v505 = vadd.f32 %v504, 1.0
        %v506 = vmul.f32 %v505, %v445
        %v507 = vand.u32 2147483647, %v445
        %vm508 = vcmp.lt.f32.partialorder %v507, 0.0004427343
        %v509 = vsel %vm508, %v506, %v503
        %v510 = vadd.f32 %v446, 1.0
        %v511 = vlog2.pop %v510
        %v512 = vmul.f32 %v511, 0.6931472
        %v513 = vmul.f32 -0.5, %v446
        %v514 = vadd.f32 %v513, 1.0
        %v515 = vmul.f32 %v514, %v446
        %v516 = vand.u32 2147483647, %v446
        %vm517 = vcmp.lt.f32.partialorder %v516, 0.0004427343
        %v518 = vsel %vm517, %v515, %v512
        %v519 = vsub.f32 0.0, %v439
        %v520 = vsub.f32 0.0, %v440
        %v521 = vsub.f32 0.0, %v441
        %v522 = vsub.f32 0.0, %v442
        %v523 = vsub.f32 0.0, %v443
        %v524 = vsub.f32 0.0, %v444
        %v525 = vsub.f32 0.0, %v445
        %v526 = vsub.f32 0.0, %v446
        %v527 = vadd.f32 %v519, 1.0
        %v528 = vlog2.pop %v527
        %v529 = vmul.f32 %v528, 0.6931472
        %v530 = vmul.f32 -0.5, %v519
        %v531 = vadd.f32 %v530, 1.0
        %v532 = vmul.f32 %v531, %v519
        %v533 = vand.u32 2147483647, %v519
        %vm534 = vcmp.lt.f32.partialorder %v533, 0.0004427343
        %v535 = vsel %vm534, %v532, %v529
        %v536 = vadd.f32 %v520, 1.0
        %v537 = vlog2.pop %v536
        %v538 = vmul.f32 %v537, 0.6931472
        %v539 = vmul.f32 -0.5, %v520
        %v540 = vadd.f32 %v539, 1.0
        %v541 = vmul.f32 %v540, %v520
        %v542 = vand.u32 2147483647, %v520
        %vm543 = vcmp.lt.f32.partialorder %v542, 0.0004427343
        %v544 = vsel %vm543, %v541, %v538
        %v545 = vadd.f32 %v521, 1.0
        %v546 = vlog2.pop %v545
        %v547 = vmul.f32 %v546, 0.6931472
        %v548 = vmul.f32 -0.5, %v521
        %v549 = vadd.f32 %v548, 1.0
        %v550 = vmul.f32 %v549, %v521
        %v551 = vand.u32 2147483647, %v521
        %vm552 = vcmp.lt.f32.partialorder %v551, 0.0004427343
        %v553 = vsel %vm552, %v550, %v547
        %v554 = vadd.f32 %v522, 1.0
        %v555 = vlog2.pop %v554
        %v556 = vmul.f32 %v555, 0.6931472
        %v557 = vmul.f32 -0.5, %v522
        %v558 = vadd.f32 %v557, 1.0
        %v559 = vmul.f32 %v558, %v522
        %v560 = vand.u32 2147483647, %v522
        %vm561 = vcmp.lt.f32.partialorder %v560, 0.0004427343
        %v562 = vsel %vm561, %v559, %v556
        %v563 = vadd.f32 %v523, 1.0
        %v564 = vlog2.pop %v563
        %v565 = vmul.f32 %v564, 0.6931472
        %v566 = vmul.f32 -0.5, %v523
        %v567 = vadd.f32 %v566, 1.0
        %v568 = vmul.f32 %v567, %v523
        %v569 = vand.u32 2147483647, %v523
        %vm570 = vcmp.lt.f32.partialorder %v569, 0.0004427343
        %v571 = vsel %vm570, %v568, %v565
        %v572 = vadd.f32 %v524, 1.0
        %v573 = vlog2.pop %v572
        %v574 = vmul.f32 %v573, 0.6931472
        %v575 = vmul.f32 -0.5, %v524
        %v576 = vadd.f32 %v575, 1.0
        %v577 = vmul.f32 %v576, %v524
        %v578 = vand.u32 2147483647, %v524
        %vm579 = vcmp.lt.f32.partialorder %v578, 0.0004427343
        %v580 = vsel %vm579, %v577, %v574
        %v581 = vadd.f32 %v525, 1.0
        %v582 = vlog2.pop %v581
        %v583 = vmul.f32 %v582, 0.6931472
        %v584 = vmul.f32 -0.5, %v525
        %v585 = vadd.f32 %v584, 1.0
        %v586 = vmul.f32 %v585, %v525
        %v587 = vand.u32 2147483647, %v525
        %vm588 = vcmp.lt.f32.partialorder %v587, 0.0004427343
        %v589 = vsel %vm588, %v586, %v583
        %v590 = vadd.f32 %v526, 1.0
        %v591 = vlog2.pop %v590
        %v592 = vmul.f32 %v591, 0.6931472
        %v593 = vmul.f32 -0.5, %v526
        %v594 = vadd.f32 %v593, 1.0
        %v595 = vmul.f32 %v594, %v526
        %v596 = vand.u32 2147483647, %v526
        %vm597 = vcmp.lt.f32.partialorder %v596, 0.0004427343
        %v598 = vsel %vm597, %v595, %v592
        %v599 = vsub.f32 %v455, %v535
        %v600 = vsub.f32 %v464, %v544
        %v601 = vsub.f32 %v473, %v553
        %v602 = vsub.f32 %v482, %v562
        %v603 = vsub.f32 %v491, %v571
        %v604 = vsub.f32 %v500, %v580
        %v605 = vsub.f32 %v509, %v589
        %v606 = vsub.f32 %v518, %v598
        %v607 = vmul.f32 %v599, 0.5
        %v608 = vmul.f32 %v600, 0.5
        %v609 = vmul.f32 %v601, 0.5
        %v610 = vmul.f32 %v602, 0.5
        %v611 = vmul.f32 %v603, 0.5
        %v612 = vmul.f32 %v604, 0.5
        %v613 = vmul.f32 %v605, 0.5
        %v614 = vmul.f32 %v606, 0.5
        %v615 = vmul.f32 %v423, %v607
        %v616 = vmul.f32 %v424, %v608
        %v617 = vmul.f32 %v425, %v609
        %v618 = vmul.f32 %v426, %v610
        %v619 = vmul.f32 %v427, %v611
        %v620 = vmul.f32 %v428, %v612
        %v621 = vmul.f32 %v429, %v613
        %v622 = vmul.f32 %v430, %v614
        %v623 = vtanh.pop %v615
        %v624 = vtanh.pop %v616
        %v625 = vtanh.pop %v617
        %v626 = vtanh.pop %v618
        %v627 = vtanh.pop %v619
        %v628 = vtanh.pop %v620
        %v629 = vtanh.pop %v621
        %v630 = vtanh.pop %v622
        %v631 = vmul.f32 %v623, %v407
        %v632 = vmul.f32 %v624, %v408
        %v633 = vmul.f32 %v625, %v409
        %v634 = vmul.f32 %v626, %v410
        %v635 = vmul.f32 %v627, %v411
        %v636 = vmul.f32 %v628, %v412
        %v637 = vmul.f32 %v629, %v413
        %v638 = vmul.f32 %v630, %v414
        %v639 = vmul.f32 %v631, %v337
        %v640 = vmul.f32 %v632, %v342
        %v641 = vmul.f32 %v633, %v347
        %v642 = vmul.f32 %v634, %v352
        %v643 = vmul.f32 %v635, %v357
        %v644 = vmul.f32 %v636, %v362
        %v645 = vmul.f32 %v637, %v367
        %v646 = vmul.f32 %v638, %v372
        %v647 = vand.u32 2147483647, %v337
        %v648 = vand.u32 2147483647, %v342
        %v649 = vand.u32 2147483647, %v347
        %v650 = vand.u32 2147483647, %v352
        %v651 = vand.u32 2147483647, %v357
        %v652 = vand.u32 2147483647, %v362
        %v653 = vand.u32 2147483647, %v367
        %v654 = vand.u32 2147483647, %v372
        %655 = vadd.xlane.f32.xlu0 %v647
        %v656 = vpop.xlane.xlu0 %655
        %657 = vadd.xlane.f32.xlu0 %v648
        %v658 = vpop.xlane.xlu0 %657
        %659 = vadd.xlane.f32.xlu0 %v649
        %v660 = vpop.xlane.xlu0 %659
        %661 = vadd.xlane.f32.xlu0 %v650
        %v662 = vpop.xlane.xlu0 %661
        %663 = vadd.xlane.f32.xlu0 %v651
        %v664 = vpop.xlane.xlu0 %663
        %665 = vadd.xlane.f32.xlu0 %v652
        %v666 = vpop.xlane.xlu0 %665
        %667 = vadd.xlane.f32.xlu0 %v653
        %v668 = vpop.xlane.xlu0 %667
        %669 = vadd.xlane.f32.xlu0 %v654
        %v670 = vpop.xlane.xlu0 %669
        %vm671 = vcmp.eq.f32.partialorder %v656, 0.0
        %vm672 = vcmp.eq.f32.partialorder %v658, 0.0
        %vm673 = vcmp.eq.f32.partialorder %v660, 0.0
        %vm674 = vcmp.eq.f32.partialorder %v662, 0.0
        %vm675 = vcmp.eq.f32.partialorder %v664, 0.0
        %vm676 = vcmp.eq.f32.partialorder %v666, 0.0
        %vm677 = vcmp.eq.f32.partialorder %v668, 0.0
        %vm678 = vcmp.eq.f32.partialorder %v670, 0.0
        %v679 = vsel %vm671, 1, 0
        %v680 = vsel %vm672, 1, 0
        %v681 = vsel %vm673, 1, 0
        %v682 = vsel %vm674, 1, 0
        %v683 = vsel %vm675, 1, 0
        %v684 = vsel %vm676, 1, 0
        %v685 = vsel %vm677, 1, 0
        %v686 = vsel %vm678, 1, 0
        %vm687 = vcmp.eq.s32.totalorder %v679, 1
        %vm688 = vcmp.eq.s32.totalorder %v680, 1
        %vm689 = vcmp.eq.s32.totalorder %v681, 1
        %vm690 = vcmp.eq.s32.totalorder %v682, 1
        %vm691 = vcmp.eq.s32.totalorder %v683, 1
        %vm692 = vcmp.eq.s32.totalorder %v684, 1
        %vm693 = vcmp.eq.s32.totalorder %v685, 1
        %vm694 = vcmp.eq.s32.totalorder %v686, 1
        %v695 = vsel %vm687, 0.0, %v639
        %v696 = vsel %vm688, 0.0, %v640
        %v697 = vsel %vm689, 0.0, %v641
        %v698 = vsel %vm690, 0.0, %v642
        %v699 = vsel %vm691, 0.0, %v643
        %v700 = vsel %vm692, 0.0, %v644
        %v701 = vsel %vm693, 0.0, %v645
        %v702 = vsel %vm694, 0.0, %v646
        %v703 = vmul.f32 %v695, %v695
        %v704 = vmul.f32 %v696, %v696
        %v705 = vmul.f32 %v697, %v697
        %v706 = vmul.f32 %v698, %v698
        %v707 = vmul.f32 %v699, %v699
        %v708 = vmul.f32 %v700, %v700
        %v709 = vmul.f32 %v701, %v701
        %v710 = vmul.f32 %v702, %v702
        %711 = vadd.xlane.f32.xlu0 %v703
        %v712 = vpop.xlane.xlu0 %711
        %713 = vadd.xlane.f32.xlu0 %v704
        %v714 = vpop.xlane.xlu0 %713
        %715 = vadd.xlane.f32.xlu0 %v705
        %v716 = vpop.xlane.xlu0 %715
        %717 = vadd.xlane.f32.xlu0 %v706
        %v718 = vpop.xlane.xlu0 %717
        %719 = vadd.xlane.f32.xlu0 %v707
        %v720 = vpop.xlane.xlu0 %719
        %721 = vadd.xlane.f32.xlu0 %v708
        %v722 = vpop.xlane.xlu0 %721
        %723 = vadd.xlane.f32.xlu0 %v709
        %v724 = vpop.xlane.xlu0 %723
        %725 = vadd.xlane.f32.xlu0 %v710
        %v726 = vpop.xlane.xlu0 %725
        %v727 = vmax.f32 %v712, 1e-30
        %v728 = vmax.f32 %v714, 1e-30
        %v729 = vmax.f32 %v716, 1e-30
        %v730 = vmax.f32 %v718, 1e-30
        %v731 = vmax.f32 %v720, 1e-30
        %v732 = vmax.f32 %v722, 1e-30
        %v733 = vmax.f32 %v724, 1e-30
        %v734 = vmax.f32 %v726, 1e-30
        %v735 = vrsqrt.pop %v727
        %v736 = vrsqrt.pop %v728
        %v737 = vrsqrt.pop %v729
        %v738 = vrsqrt.pop %v730
        %v739 = vrsqrt.pop %v731
        %v740 = vrsqrt.pop %v732
        %v741 = vrsqrt.pop %v733
        %v742 = vrsqrt.pop %v734
        %v743 = vmul.f32 %v727, %v735
        %v744 = vmul.f32 %v728, %v736
        %v745 = vmul.f32 %v729, %v737
        %v746 = vmul.f32 %v730, %v738
        %v747 = vmul.f32 %v731, %v739
        %v748 = vmul.f32 %v732, %v740
        %v749 = vmul.f32 %v733, %v741
        %v750 = vmul.f32 %v734, %v742
        %vm751 = vcmp.gt.f32.partialorder %v743, 0.996
        %vm752 = vcmp.gt.f32.partialorder %v744, 0.996
        %vm753 = vcmp.gt.f32.partialorder %v745, 0.996
        %vm754 = vcmp.gt.f32.partialorder %v746, 0.996
        %vm755 = vcmp.gt.f32.partialorder %v747, 0.996
        %vm756 = vcmp.gt.f32.partialorder %v748, 0.996
        %vm757 = vcmp.gt.f32.partialorder %v749, 0.996
        %vm758 = vcmp.gt.f32.partialorder %v750, 0.996
        %v759 = vmul.f32 %v735, 0.996
        %v760 = vmul.f32 %v736, 0.996
        %v761 = vmul.f32 %v737, 0.996
        %v762 = vmul.f32 %v738, 0.996
        %v763 = vmul.f32 %v739, 0.996
        %v764 = vmul.f32 %v740, 0.996
        %v765 = vmul.f32 %v741, 0.996
        %v766 = vmul.f32 %v742, 0.996
        %v767 = vmul.f32 %v695, %v759
        %v768 = vmul.f32 %v696, %v760
        %v769 = vmul.f32 %v697, %v761
        %v770 = vmul.f32 %v698, %v762
        %v771 = vmul.f32 %v699, %v763
        %v772 = vmul.f32 %v700, %v764
        %v773 = vmul.f32 %v701, %v765
        %v774 = vmul.f32 %v702, %v766
        %v775 = vsel %vm751, 1, 0
        %v776 = vsel %vm752, 1, 0
        %v777 = vsel %vm753, 1, 0
        %v778 = vsel %vm754, 1, 0
        %v779 = vsel %vm755, 1, 0
        %v780 = vsel %vm756, 1, 0
        %v781 = vsel %vm757, 1, 0
        %v782 = vsel %vm758, 1, 0
        %vm783 = vcmp.eq.s32.totalorder %v775, 1
        %vm784 = vcmp.eq.s32.totalorder %v776, 1
        %vm785 = vcmp.eq.s32.totalorder %v777, 1
        %vm786 = vcmp.eq.s32.totalorder %v778, 1
        %vm787 = vcmp.eq.s32.totalorder %v779, 1
        %vm788 = vcmp.eq.s32.totalorder %v780, 1
        %vm789 = vcmp.eq.s32.totalorder %v781, 1
        %vm790 = vcmp.eq.s32.totalorder %v782, 1
        %v791 = vsel %vm783, %v767, %v695
        %v792 = vsel %vm784, %v768, %v696
        %v793 = vsel %vm785, %v769, %v697
        %v794 = vsel %vm786, %v770, %v698
        %v795 = vsel %vm787, %v771, %v699
        %v796 = vsel %vm788, %v772, %v700
        %v797 = vsel %vm789, %v773, %v701
        %v798 = vsel %vm790, %v774, %v702
        %v799 = vmul.f32 %v188, %v188
        %vm800 = vcmask 1040384
        %v801 = vsel %vm800, %v799, 0.0
        %802 = vadd.xlane.f32.xlu0 %v801
        %v803 = vpop.xlane.xlu0 %802
        %v804 = vmax.f32 %v803, 1e-30
        %v805 = vrsqrt.pop %v804
        %v806 = vmul.f32 %v804, %v805
        %v807 = vtanh.pop %v806
        %v808 = vmul.f32 %v807, %v805
        %v809 = vmul.f32 %v808, %v188
        %v810 = vmul.f32 %v809, %v809
        %v811 = vsel %vm800, %v810, 0.0
        %812 = vadd.xlane.f32.xlu0 %v811
        %v813 = vpop.xlane.xlu0 %812
        %v814 = vmax.f32 %v813, 1e-30
        %v815 = vrsqrt.pop %v814
        %v816 = vmul.f32 %v814, %v815
        %vm817 = vcmp.gt.f32.partialorder %v816, 0.996
        %v818 = vmul.f32 %v815, 0.996
        %v819 = vmul.f32 %v809, %v818
        %v820 = vsel %vm817, 1, 0
        %vm821 = vcmp.eq.s32.totalorder %v820, 1
        %v822 = vsel %vm821, %v819, %v809
        %v823 = vmul.f32 %v791, %v791
        %v824 = vmul.f32 %v792, %v792
        %v825 = vmul.f32 %v793, %v793
        %v826 = vmul.f32 %v794, %v794
        %v827 = vmul.f32 %v795, %v795
        %v828 = vmul.f32 %v796, %v796
        %v829 = vmul.f32 %v797, %v797
        %v830 = vmul.f32 %v798, %v798
        %831 = vadd.xlane.f32.xlu0 %v823
        %v832 = vpop.xlane.xlu0 %831
        %833 = vadd.xlane.f32.xlu0 %v824
        %v834 = vpop.xlane.xlu0 %833
        %835 = vadd.xlane.f32.xlu0 %v825
        %v836 = vpop.xlane.xlu0 %835
        %837 = vadd.xlane.f32.xlu0 %v826
        %v838 = vpop.xlane.xlu0 %837
        %839 = vadd.xlane.f32.xlu0 %v827
        %v840 = vpop.xlane.xlu0 %839
        %841 = vadd.xlane.f32.xlu0 %v828
        %v842 = vpop.xlane.xlu0 %841
        %843 = vadd.xlane.f32.xlu0 %v829
        %v844 = vpop.xlane.xlu0 %843
        %845 = vadd.xlane.f32.xlu0 %v830
        %v846 = vpop.xlane.xlu0 %845
        %v847 = vmul.f32 %v822, %v822
        %v848 = vsel %vm800, %v847, 0.0
        %849 = vadd.xlane.f32.xlu0 %v848
        %v850 = vpop.xlane.xlu0 %849
        %v851 = vlaneseq
        %v852 = vshrl.u32 %v851, 7
        %v853 = vsub.s32 0, %v852
        %v854 = vrot.slane %v822, %v853
        %v855 = vmul.f32 %v791, %v854
        %v856 = vmul.f32 %v792, %v854
        %v857 = vmul.f32 %v793, %v854
        %v858 = vmul.f32 %v794, %v854
        %v859 = vmul.f32 %v795, %v854
        %v860 = vmul.f32 %v796, %v854
        %v861 = vmul.f32 %v797, %v854
        %v862 = vmul.f32 %v798, %v854
        %863 = vadd.xlane.f32.xlu0 %v855
        %v864 = vpop.xlane.xlu0 %863
        %865 = vadd.xlane.f32.xlu0 %v856
        %v866 = vpop.xlane.xlu0 %865
        %867 = vadd.xlane.f32.xlu0 %v857
        %v868 = vpop.xlane.xlu0 %867
        %869 = vadd.xlane.f32.xlu0 %v858
        %v870 = vpop.xlane.xlu0 %869
        %871 = vadd.xlane.f32.xlu0 %v859
        %v872 = vpop.xlane.xlu0 %871
        %873 = vadd.xlane.f32.xlu0 %v860
        %v874 = vpop.xlane.xlu0 %873
        %875 = vadd.xlane.f32.xlu0 %v861
        %v876 = vpop.xlane.xlu0 %875
        %877 = vadd.xlane.f32.xlu0 %v862
        %v878 = vpop.xlane.xlu0 %877
        %v879 = vmul.f32 %v864, 2.0
        %v880 = vmul.f32 %v866, 2.0
        %v881 = vmul.f32 %v868, 2.0
        %v882 = vmul.f32 %v870, 2.0
        %v883 = vmul.f32 %v872, 2.0
        %v884 = vmul.f32 %v874, 2.0
        %v885 = vmul.f32 %v876, 2.0
        %v886 = vmul.f32 %v878, 2.0
        %v887 = vadd.f32 %v879, 1.0
        %v888 = vadd.f32 %v880, 1.0
        %v889 = vadd.f32 %v881, 1.0
        %v890 = vadd.f32 %v882, 1.0
        %v891 = vadd.f32 %v883, 1.0
        %v892 = vadd.f32 %v884, 1.0
        %v893 = vadd.f32 %v885, 1.0
        %v894 = vadd.f32 %v886, 1.0
        %v895 = vlaneseq
        %v896 = vshrl.u32 %v895, 7
        %v897 = vsub.s32 0, %v896
        %v898 = vrot.slane %v850, %v897
        %v899 = vadd.f32 %v887, %v898
        %v900 = vadd.f32 %v888, %v898
        %v901 = vadd.f32 %v889, %v898
        %v902 = vadd.f32 %v890, %v898
        %v903 = vadd.f32 %v891, %v898
        %v904 = vadd.f32 %v892, %v898
        %v905 = vadd.f32 %v893, %v898
        %v906 = vadd.f32 %v894, %v898
        %v907 = vmul.f32 %v899, %v791
        %v908 = vmul.f32 %v900, %v792
        %v909 = vmul.f32 %v901, %v793
        %v910 = vmul.f32 %v902, %v794
        %v911 = vmul.f32 %v903, %v795
        %v912 = vmul.f32 %v904, %v796
        %v913 = vmul.f32 %v905, %v797
        %v914 = vmul.f32 %v906, %v798
        %v915 = vsub.f32 1.0, %v832
        %v916 = vsub.f32 1.0, %v834
        %v917 = vsub.f32 1.0, %v836
        %v918 = vsub.f32 1.0, %v838
        %v919 = vsub.f32 1.0, %v840
        %v920 = vsub.f32 1.0, %v842
        %v921 = vsub.f32 1.0, %v844
        %v922 = vsub.f32 1.0, %v846
        %v923 = vmul.f32 %v915, %v854
        %v924 = vmul.f32 %v916, %v854
        %v925 = vmul.f32 %v917, %v854
        %v926 = vmul.f32 %v918, %v854
        %v927 = vmul.f32 %v919, %v854
        %v928 = vmul.f32 %v920, %v854
        %v929 = vmul.f32 %v921, %v854
        %v930 = vmul.f32 %v922, %v854
        %v931 = vadd.f32 %v907, %v923
        %v932 = vadd.f32 %v908, %v924
        %v933 = vadd.f32 %v909, %v925
        %v934 = vadd.f32 %v910, %v926
        %v935 = vadd.f32 %v911, %v927
        %v936 = vadd.f32 %v912, %v928
        %v937 = vadd.f32 %v913, %v929
        %v938 = vadd.f32 %v914, %v930
        %v939 = vmul.f32 %v832, %v898
        %v940 = vmul.f32 %v834, %v898
        %v941 = vmul.f32 %v836, %v898
        %v942 = vmul.f32 %v838, %v898
        %v943 = vmul.f32 %v840, %v898
        %v944 = vmul.f32 %v842, %v898
        %v945 = vmul.f32 %v844, %v898
        %v946 = vmul.f32 %v846, %v898
        %v947 = vadd.f32 %v887, %v939
        %v948 = vadd.f32 %v888, %v940
        %v949 = vadd.f32 %v889, %v941
        %v950 = vadd.f32 %v890, %v942
        %v951 = vadd.f32 %v891, %v943
        %v952 = vadd.f32 %v892, %v944
        %v953 = vadd.f32 %v893, %v945
        %v954 = vadd.f32 %v894, %v946
        %v955 = vmax.f32 %v947, 1e-15
        %v956 = vmax.f32 %v948, 1e-15
        %v957 = vmax.f32 %v949, 1e-15
        %v958 = vmax.f32 %v950, 1e-15
        %v959 = vmax.f32 %v951, 1e-15
        %v960 = vmax.f32 %v952, 1e-15
        %v961 = vmax.f32 %v953, 1e-15
        %v962 = vmax.f32 %v954, 1e-15
        %v963 = vrcp.pop %v955
        %v964 = vrcp.pop %v956
        %v965 = vrcp.pop %v957
        %v966 = vrcp.pop %v958
        %v967 = vrcp.pop %v959
        %v968 = vrcp.pop %v960
        %v969 = vrcp.pop %v961
        %v970 = vrcp.pop %v962
        %v971 = vmul.f32 %v931, %v963
        %v972 = vmul.f32 %v932, %v964
        %v973 = vmul.f32 %v933, %v965
        %v974 = vmul.f32 %v934, %v966
        %v975 = vmul.f32 %v935, %v967
        %v976 = vmul.f32 %v936, %v968
        %v977 = vmul.f32 %v937, %v969
        %v978 = vmul.f32 %v938, %v970
        %v979 = vmul.f32 %v971, %v971
        %v980 = vmul.f32 %v972, %v972
        %v981 = vmul.f32 %v973, %v973
        %v982 = vmul.f32 %v974, %v974
        %v983 = vmul.f32 %v975, %v975
        %v984 = vmul.f32 %v976, %v976
        %v985 = vmul.f32 %v977, %v977
        %v986 = vmul.f32 %v978, %v978
        %987 = vadd.xlane.f32.xlu0 %v979
        %v988 = vpop.xlane.xlu0 %987
        %989 = vadd.xlane.f32.xlu0 %v980
        %v990 = vpop.xlane.xlu0 %989
        %991 = vadd.xlane.f32.xlu0 %v981
        %v992 = vpop.xlane.xlu0 %991
        %993 = vadd.xlane.f32.xlu0 %v982
        %v994 = vpop.xlane.xlu0 %993
        %995 = vadd.xlane.f32.xlu0 %v983
        %v996 = vpop.xlane.xlu0 %995
        %997 = vadd.xlane.f32.xlu0 %v984
        %v998 = vpop.xlane.xlu0 %997
        %999 = vadd.xlane.f32.xlu0 %v985
        %v1000 = vpop.xlane.xlu0 %999
        %1001 = vadd.xlane.f32.xlu0 %v986
        %v1002 = vpop.xlane.xlu0 %1001
        %v1003 = vmax.f32 %v988, 1e-30
        %v1004 = vmax.f32 %v990, 1e-30
        %v1005 = vmax.f32 %v992, 1e-30
        %v1006 = vmax.f32 %v994, 1e-30
        %v1007 = vmax.f32 %v996, 1e-30
        %v1008 = vmax.f32 %v998, 1e-30
        %v1009 = vmax.f32 %v1000, 1e-30
        %v1010 = vmax.f32 %v1002, 1e-30
        %v1011 = vrsqrt.pop %v1003
        %v1012 = vrsqrt.pop %v1004
        %v1013 = vrsqrt.pop %v1005
        %v1014 = vrsqrt.pop %v1006
        %v1015 = vrsqrt.pop %v1007
        %v1016 = vrsqrt.pop %v1008
        %v1017 = vrsqrt.pop %v1009
        %v1018 = vrsqrt.pop %v1010
        %v1019 = vmul.f32 %v1003, %v1011
        %v1020 = vmul.f32 %v1004, %v1012
        %v1021 = vmul.f32 %v1005, %v1013
        %v1022 = vmul.f32 %v1006, %v1014
        %v1023 = vmul.f32 %v1007, %v1015
        %v1024 = vmul.f32 %v1008, %v1016
        %v1025 = vmul.f32 %v1009, %v1017
        %v1026 = vmul.f32 %v1010, %v1018
        %vm1027 = vcmp.gt.f32.partialorder %v1019, 0.996
        %vm1028 = vcmp.gt.f32.partialorder %v1020, 0.996
        %vm1029 = vcmp.gt.f32.partialorder %v1021, 0.996
        %vm1030 = vcmp.gt.f32.partialorder %v1022, 0.996
        %vm1031 = vcmp.gt.f32.partialorder %v1023, 0.996
        %vm1032 = vcmp.gt.f32.partialorder %v1024, 0.996
        %vm1033 = vcmp.gt.f32.partialorder %v1025, 0.996
        %vm1034 = vcmp.gt.f32.partialorder %v1026, 0.996
        %v1035 = vmul.f32 %v1011, 0.996
        %v1036 = vmul.f32 %v1012, 0.996
        %v1037 = vmul.f32 %v1013, 0.996
        %v1038 = vmul.f32 %v1014, 0.996
        %v1039 = vmul.f32 %v1015, 0.996
        %v1040 = vmul.f32 %v1016, 0.996
        %v1041 = vmul.f32 %v1017, 0.996
        %v1042 = vmul.f32 %v1018, 0.996
        %v1043 = vmul.f32 %v971, %v1035
        %v1044 = vmul.f32 %v972, %v1036
        %v1045 = vmul.f32 %v973, %v1037
        %v1046 = vmul.f32 %v974, %v1038
        %v1047 = vmul.f32 %v975, %v1039
        %v1048 = vmul.f32 %v976, %v1040
        %v1049 = vmul.f32 %v977, %v1041
        %v1050 = vmul.f32 %v978, %v1042
        %v1051 = vsel %vm1027, 1, 0
        %v1052 = vsel %vm1028, 1, 0
        %v1053 = vsel %vm1029, 1, 0
        %v1054 = vsel %vm1030, 1, 0
        %v1055 = vsel %vm1031, 1, 0
        %v1056 = vsel %vm1032, 1, 0
        %v1057 = vsel %vm1033, 1, 0
        %v1058 = vsel %vm1034, 1, 0
        %vm1059 = vcmp.eq.s32.totalorder %v1051, 1
        %vm1060 = vcmp.eq.s32.totalorder %v1052, 1
        %vm1061 = vcmp.eq.s32.totalorder %v1053, 1
        %vm1062 = vcmp.eq.s32.totalorder %v1054, 1
        %vm1063 = vcmp.eq.s32.totalorder %v1055, 1
        %vm1064 = vcmp.eq.s32.totalorder %v1056, 1
        %vm1065 = vcmp.eq.s32.totalorder %v1057, 1
        %vm1066 = vcmp.eq.s32.totalorder %v1058, 1
        %v1067 = vsel %vm1059, %v1043, %v971
        %v1068 = vsel %vm1060, %v1044, %v972
        %v1069 = vsel %vm1061, %v1045, %v973
        %v1070 = vsel %vm1062, %v1046, %v974
        %v1071 = vsel %vm1063, %v1047, %v975
        %v1072 = vsel %vm1064, %v1048, %v976
        %v1073 = vsel %vm1065, %v1049, %v977
        %v1074 = vsel %vm1066, %v1050, %v978
        %v1075 = vmul.f32 %v1067, %v1067
        %v1076 = vmul.f32 %v1068, %v1068
        %v1077 = vmul.f32 %v1069, %v1069
        %v1078 = vmul.f32 %v1070, %v1070
        %v1079 = vmul.f32 %v1071, %v1071
        %v1080 = vmul.f32 %v1072, %v1072
        %v1081 = vmul.f32 %v1073, %v1073
        %v1082 = vmul.f32 %v1074, %v1074
        %1083 = vadd.xlane.f32.xlu0 %v1075
        %v1084 = vpop.xlane.xlu0 %1083
        %1085 = vadd.xlane.f32.xlu0 %v1076
        %v1086 = vpop.xlane.xlu0 %1085
        %1087 = vadd.xlane.f32.xlu0 %v1077
        %v1088 = vpop.xlane.xlu0 %1087
        %1089 = vadd.xlane.f32.xlu0 %v1078
        %v1090 = vpop.xlane.xlu0 %1089
        %1091 = vadd.xlane.f32.xlu0 %v1079
        %v1092 = vpop.xlane.xlu0 %1091
        %1093 = vadd.xlane.f32.xlu0 %v1080
        %v1094 = vpop.xlane.xlu0 %1093
        %1095 = vadd.xlane.f32.xlu0 %v1081
        %v1096 = vpop.xlane.xlu0 %1095
        %1097 = vadd.xlane.f32.xlu0 %v1082
        %v1098 = vpop.xlane.xlu0 %1097
        %v1099 = vmax.f32 %v1084, 1e-30
        %v1100 = vmax.f32 %v1086, 1e-30
        %v1101 = vmax.f32 %v1088, 1e-30
        %v1102 = vmax.f32 %v1090, 1e-30
        %v1103 = vmax.f32 %v1092, 1e-30
        %v1104 = vmax.f32 %v1094, 1e-30
        %v1105 = vmax.f32 %v1096, 1e-30
        %v1106 = vmax.f32 %v1098, 1e-30
        %v1107 = vrsqrt.pop %v1099
        %v1108 = vrsqrt.pop %v1100
        %v1109 = vrsqrt.pop %v1101
        %v1110 = vrsqrt.pop %v1102
        %v1111 = vrsqrt.pop %v1103
        %v1112 = vrsqrt.pop %v1104
        %v1113 = vrsqrt.pop %v1105
        %v1114 = vrsqrt.pop %v1106
        %v1115 = vmul.f32 %v1099, %v1107
        %v1116 = vmul.f32 %v1100, %v1108
        %v1117 = vmul.f32 %v1101, %v1109
        %v1118 = vmul.f32 %v1102, %v1110
        %v1119 = vmul.f32 %v1103, %v1111
        %v1120 = vmul.f32 %v1104, %v1112
        %v1121 = vmul.f32 %v1105, %v1113
        %v1122 = vmul.f32 %v1106, %v1114
        %v1123 = vmax.f32 %v1115, -0.9999999
        %v1124 = vmax.f32 %v1116, -0.9999999
        %v1125 = vmax.f32 %v1117, -0.9999999
        %v1126 = vmax.f32 %v1118, -0.9999999
        %v1127 = vmax.f32 %v1119, -0.9999999
        %v1128 = vmax.f32 %v1120, -0.9999999
        %v1129 = vmax.f32 %v1121, -0.9999999
        %v1130 = vmax.f32 %v1122, -0.9999999
        %v1131 = vmin.f32 %v1123, 0.9999999
        %v1132 = vmin.f32 %v1124, 0.9999999
        %v1133 = vmin.f32 %v1125, 0.9999999
        %v1134 = vmin.f32 %v1126, 0.9999999
        %v1135 = vmin.f32 %v1127, 0.9999999
        %v1136 = vmin.f32 %v1128, 0.9999999
        %v1137 = vmin.f32 %v1129, 0.9999999
        %v1138 = vmin.f32 %v1130, 0.9999999
        %v1139 = vadd.f32 %v1131, 1.0
        %v1140 = vlog2.pop %v1139
        %v1141 = vmul.f32 %v1140, 0.6931472
        %v1142 = vmul.f32 -0.5, %v1131
        %v1143 = vadd.f32 %v1142, 1.0
        %v1144 = vmul.f32 %v1143, %v1131
        %v1145 = vand.u32 2147483647, %v1131
        %vm1146 = vcmp.lt.f32.partialorder %v1145, 0.0004427343
        %v1147 = vsel %vm1146, %v1144, %v1141
        %v1148 = vadd.f32 %v1132, 1.0
        %v1149 = vlog2.pop %v1148
        %v1150 = vmul.f32 %v1149, 0.6931472
        %v1151 = vmul.f32 -0.5, %v1132
        %v1152 = vadd.f32 %v1151, 1.0
        %v1153 = vmul.f32 %v1152, %v1132
        %v1154 = vand.u32 2147483647, %v1132
        %vm1155 = vcmp.lt.f32.partialorder %v1154, 0.0004427343
        %v1156 = vsel %vm1155, %v1153, %v1150
        %v1157 = vadd.f32 %v1133, 1.0
        %v1158 = vlog2.pop %v1157
        %v1159 = vmul.f32 %v1158, 0.6931472
        %v1160 = vmul.f32 -0.5, %v1133
        %v1161 = vadd.f32 %v1160, 1.0
        %v1162 = vmul.f32 %v1161, %v1133
        %v1163 = vand.u32 2147483647, %v1133
        %vm1164 = vcmp.lt.f32.partialorder %v1163, 0.0004427343
        %v1165 = vsel %vm1164, %v1162, %v1159
        %v1166 = vadd.f32 %v1134, 1.0
        %v1167 = vlog2.pop %v1166
        %v1168 = vmul.f32 %v1167, 0.6931472
        %v1169 = vmul.f32 -0.5, %v1134
        %v1170 = vadd.f32 %v1169, 1.0
        %v1171 = vmul.f32 %v1170, %v1134
        %v1172 = vand.u32 2147483647, %v1134
        %vm1173 = vcmp.lt.f32.partialorder %v1172, 0.0004427343
        %v1174 = vsel %vm1173, %v1171, %v1168
        %v1175 = vadd.f32 %v1135, 1.0
        %v1176 = vlog2.pop %v1175
        %v1177 = vmul.f32 %v1176, 0.6931472
        %v1178 = vmul.f32 -0.5, %v1135
        %v1179 = vadd.f32 %v1178, 1.0
        %v1180 = vmul.f32 %v1179, %v1135
        %v1181 = vand.u32 2147483647, %v1135
        %vm1182 = vcmp.lt.f32.partialorder %v1181, 0.0004427343
        %v1183 = vsel %vm1182, %v1180, %v1177
        %v1184 = vadd.f32 %v1136, 1.0
        %v1185 = vlog2.pop %v1184
        %v1186 = vmul.f32 %v1185, 0.6931472
        %v1187 = vmul.f32 -0.5, %v1136
        %v1188 = vadd.f32 %v1187, 1.0
        %v1189 = vmul.f32 %v1188, %v1136
        %v1190 = vand.u32 2147483647, %v1136
        %vm1191 = vcmp.lt.f32.partialorder %v1190, 0.0004427343
        %v1192 = vsel %vm1191, %v1189, %v1186
        %v1193 = vadd.f32 %v1137, 1.0
        %v1194 = vlog2.pop %v1193
        %v1195 = vmul.f32 %v1194, 0.6931472
        %v1196 = vmul.f32 -0.5, %v1137
        %v1197 = vadd.f32 %v1196, 1.0
        %v1198 = vmul.f32 %v1197, %v1137
        %v1199 = vand.u32 2147483647, %v1137
        %vm1200 = vcmp.lt.f32.partialorder %v1199, 0.0004427343
        %v1201 = vsel %vm1200, %v1198, %v1195
        %v1202 = vadd.f32 %v1138, 1.0
        %v1203 = vlog2.pop %v1202
        %v1204 = vmul.f32 %v1203, 0.6931472
        %v1205 = vmul.f32 -0.5, %v1138
        %v1206 = vadd.f32 %v1205, 1.0
        %v1207 = vmul.f32 %v1206, %v1138
        %v1208 = vand.u32 2147483647, %v1138
        %vm1209 = vcmp.lt.f32.partialorder %v1208, 0.0004427343
        %v1210 = vsel %vm1209, %v1207, %v1204
        %v1211 = vsub.f32 0.0, %v1131
        %v1212 = vsub.f32 0.0, %v1132
        %v1213 = vsub.f32 0.0, %v1133
        %v1214 = vsub.f32 0.0, %v1134
        %v1215 = vsub.f32 0.0, %v1135
        %v1216 = vsub.f32 0.0, %v1136
        %v1217 = vsub.f32 0.0, %v1137
        %v1218 = vsub.f32 0.0, %v1138
        %v1219 = vadd.f32 %v1211, 1.0
        %v1220 = vlog2.pop %v1219
        %v1221 = vmul.f32 %v1220, 0.6931472
        %v1222 = vmul.f32 -0.5, %v1211
        %v1223 = vadd.f32 %v1222, 1.0
        %v1224 = vmul.f32 %v1223, %v1211
        %v1225 = vand.u32 2147483647, %v1211
        %vm1226 = vcmp.lt.f32.partialorder %v1225, 0.0004427343
        %v1227 = vsel %vm1226, %v1224, %v1221
        %v1228 = vadd.f32 %v1212, 1.0
        %v1229 = vlog2.pop %v1228
        %v1230 = vmul.f32 %v1229, 0.6931472
        %v1231 = vmul.f32 -0.5, %v1212
        %v1232 = vadd.f32 %v1231, 1.0
        %v1233 = vmul.f32 %v1232, %v1212
        %v1234 = vand.u32 2147483647, %v1212
        %vm1235 = vcmp.lt.f32.partialorder %v1234, 0.0004427343
        %v1236 = vsel %vm1235, %v1233, %v1230
        %v1237 = vadd.f32 %v1213, 1.0
        %v1238 = vlog2.pop %v1237
        %v1239 = vmul.f32 %v1238, 0.6931472
        %v1240 = vmul.f32 -0.5, %v1213
        %v1241 = vadd.f32 %v1240, 1.0
        %v1242 = vmul.f32 %v1241, %v1213
        %v1243 = vand.u32 2147483647, %v1213
        %vm1244 = vcmp.lt.f32.partialorder %v1243, 0.0004427343
        %v1245 = vsel %vm1244, %v1242, %v1239
        %v1246 = vadd.f32 %v1214, 1.0
        %v1247 = vlog2.pop %v1246
        %v1248 = vmul.f32 %v1247, 0.6931472
        %v1249 = vmul.f32 -0.5, %v1214
        %v1250 = vadd.f32 %v1249, 1.0
        %v1251 = vmul.f32 %v1250, %v1214
        %v1252 = vand.u32 2147483647, %v1214
        %vm1253 = vcmp.lt.f32.partialorder %v1252, 0.0004427343
        %v1254 = vsel %vm1253, %v1251, %v1248
        %v1255 = vadd.f32 %v1215, 1.0
        %v1256 = vlog2.pop %v1255
        %v1257 = vmul.f32 %v1256, 0.6931472
        %v1258 = vmul.f32 -0.5, %v1215
        %v1259 = vadd.f32 %v1258, 1.0
        %v1260 = vmul.f32 %v1259, %v1215
        %v1261 = vand.u32 2147483647, %v1215
        %vm1262 = vcmp.lt.f32.partialorder %v1261, 0.0004427343
        %v1263 = vsel %vm1262, %v1260, %v1257
        %v1264 = vadd.f32 %v1216, 1.0
        %v1265 = vlog2.pop %v1264
        %v1266 = vmul.f32 %v1265, 0.6931472
        %v1267 = vmul.f32 -0.5, %v1216
        %v1268 = vadd.f32 %v1267, 1.0
        %v1269 = vmul.f32 %v1268, %v1216
        %v1270 = vand.u32 2147483647, %v1216
        %vm1271 = vcmp.lt.f32.partialorder %v1270, 0.0004427343
        %v1272 = vsel %vm1271, %v1269, %v1266
        %v1273 = vadd.f32 %v1217, 1.0
        %v1274 = vlog2.pop %v1273
        %v1275 = vmul.f32 %v1274, 0.6931472
        %v1276 = vmul.f32 -0.5, %v1217
        %v1277 = vadd.f32 %v1276, 1.0
        %v1278 = vmul.f32 %v1277, %v1217
        %v1279 = vand.u32 2147483647, %v1217
        %vm1280 = vcmp.lt.f32.partialorder %v1279, 0.0004427343
        %v1281 = vsel %vm1280, %v1278, %v1275
        %v1282 = vadd.f32 %v1218, 1.0
        %v1283 = vlog2.pop %v1282
        %v1284 = vmul.f32 %v1283, 0.6931472
        %v1285 = vmul.f32 -0.5, %v1218
        %v1286 = vadd.f32 %v1285, 1.0
        %v1287 = vmul.f32 %v1286, %v1218
        %v1288 = vand.u32 2147483647, %v1218
        %vm1289 = vcmp.lt.f32.partialorder %v1288, 0.0004427343
        %v1290 = vsel %vm1289, %v1287, %v1284
        %v1291 = vsub.f32 %v1147, %v1227
        %v1292 = vsub.f32 %v1156, %v1236
        %v1293 = vsub.f32 %v1165, %v1245
        %v1294 = vsub.f32 %v1174, %v1254
        %v1295 = vsub.f32 %v1183, %v1263
        %v1296 = vsub.f32 %v1192, %v1272
        %v1297 = vsub.f32 %v1201, %v1281
        %v1298 = vsub.f32 %v1210, %v1290
        %v1299 = vmul.f32 %v1291, 0.5
        %v1300 = vmul.f32 %v1292, 0.5
        %v1301 = vmul.f32 %v1293, 0.5
        %v1302 = vmul.f32 %v1294, 0.5
        %v1303 = vmul.f32 %v1295, 0.5
        %v1304 = vmul.f32 %v1296, 0.5
        %v1305 = vmul.f32 %v1297, 0.5
        %v1306 = vmul.f32 %v1298, 0.5
        %v1307 = vmul.f32 %v1299, %v1107
        %v1308 = vmul.f32 %v1300, %v1108
        %v1309 = vmul.f32 %v1301, %v1109
        %v1310 = vmul.f32 %v1302, %v1110
        %v1311 = vmul.f32 %v1303, %v1111
        %v1312 = vmul.f32 %v1304, %v1112
        %v1313 = vmul.f32 %v1305, %v1113
        %v1314 = vmul.f32 %v1306, %v1114
        %v1315 = vmul.f32 %v1307, %v1067
        %v1316 = vmul.f32 %v1308, %v1068
        %v1317 = vmul.f32 %v1309, %v1069
        %v1318 = vmul.f32 %v1310, %v1070
        %v1319 = vmul.f32 %v1311, %v1071
        %v1320 = vmul.f32 %v1312, %v1072
        %v1321 = vmul.f32 %v1313, %v1073
        %v1322 = vmul.f32 %v1314, %v1074
        %1323 = vst [vmem:[%s164] sm:$0xff] %v1315
        %1324 = vst [vmem:[%s164 + $0x8] sm:$0xff] %v1316
        %1325 = vst [vmem:[%s164 + $0x10] sm:$0xff] %v1317
        %1326 = vst [vmem:[%s164 + $0x18] sm:$0xff] %v1318
        %1327 = vst [vmem:[%s164 + $0x20] sm:$0xff] %v1319
        %1328 = vst [vmem:[%s164 + $0x28] sm:$0xff] %v1320
        %1329 = vst [vmem:[%s164 + $0x30] sm:$0xff] %v1321
        %1330 = vst [vmem:[%s164 + $0x38] sm:$0xff] %v1322
        %s1331 = sand.u32 %s93, 1
        %s1332 = scalar_lea.sflag [#allocation3], %s1331
        %s1333 = sand.u32 %s93, 1
        %s1334 = smul.addr %s1333, 64
        %s1335 = scalar_lea.vmem [#allocation2], %s1334
        // Predicated region
        $region33: #{tpu_custom_call.1} parent=31 // pred_check
          %p1336 = pneg %p103
        $region34: #{tpu_custom_call.1} parent=31 // pred_check_branch
          %1338 = sbr.rel (%p1336) target = $region36
        $region35: #{tpu_custom_call.1} parent=31 // pred_region
          %s1339 = smul.u32 8, %s17
          %s1341 = ssub.s32 1024, 1024
          %1342 = vsyncadd %s1332, %s1341
          %s1343 = smul.addr %s1339, 128
          %s1344 = scalar_lea.hbm %s3, %s1343
          %s1345 = sshll.u32 %s1335, 4
          %s1346 = int_to_ptr.vmem [resolvable:$true] %s1345
          %1351 = dma.vmem_to_hbm [thread:$0]  %s1346, 1024, %s1344, %s1332, 128, 128, 8
        $region36: #{tpu_custom_call.1} parent=31 // pred_fallthru
          _
      $region32: #{tpu_custom_call.1} parent=5 // pred_fallthru
        _
      %p1352 = scmp.le.s32.totalorder 2, %s12
      // Predicated region
      $region37: #{tpu_custom_call.1} parent=5 // pred_check
        %p1353 = pneg %p1352
      $region38: #{tpu_custom_call.1} parent=5 // pred_check_branch
        %1355 = sbr.rel (%p1353) target = $region40
      $region39: #{tpu_custom_call.1} parent=5 // pred_region
        %s1356 = ssub.s32 %s12, 2
        // Predicated region
        $region41: #{tpu_custom_call.1} parent=39 // pred_check
          %p1357 = pneg %p109
        $region42: #{tpu_custom_call.1} parent=39 // pred_check_branch
          %1359 = sbr.rel (%p1357) target = $region44
        $region43: #{tpu_custom_call.1} parent=39 // pred_region
          %s1360 = sand.u32 %s94, 1
          %s1361 = scalar_lea.sflag [#allocation3], %s1360
          %s1362 = sand.u32 %s94, 1
          %s1363 = smul.addr %s1362, 64
          %s1364 = scalar_lea.vmem [#allocation2], %s1363
          %1365 = dma.done %s1361, 1024
        $region44: #{tpu_custom_call.1} parent=39 // pred_fallthru
          _
      $region40: #{tpu_custom_call.1} parent=5 // pred_fallthru
        _
    $region6: #{tpu_custom_call.1} parent=1 // loop_footer
      %s16 = sadd.s32 1, %s12
    $region7: #{tpu_custom_call.1} parent=1 // loop_footer_branch
      %11 = sbr.rel target = $region3
    $region8: #{tpu_custom_call.1} parent=1 // loop_exit
      _
    %1366 = vsyncpa [#allocation3], 1
    %s1367 = scalar_lea.sflag [#allocation3], 1
    %1368 = vsyncpa %s1367, 1

</llo_original>
